<compile_context>
chip_gen: v7x
topology: tpu7x:2x2x1
jax: 0.10.0
libtpu: 0.0.40
codegen_flags: <defaults>
</compile_context>

<pallas_src>
import jax
import jax.numpy as jnp
from jax import lax
from jax.experimental import pallas as pl
from jax.experimental.pallas import tpu as pltpu


def _leaky(x):
    return jnp.where(x > 0, x, 0.1 * x)


def bottleneck_kernel(xp_ref, x_ref, s1_ref, t1_ref, w1_ref, b1_ref,
                      w3_ref, b3_ref, w4_ref, b4_ref,
                      o_ref, row_ref):
    # xp_ref : (1, H+2, (W+2)*C)  reflection-padded input, lane-dense rows
    # x_ref  : (1, H,   W*C)      residual, lane-dense rows
    # row_ref: VMEM scratch (H+2, (W+2)*P)
    _, H, _ = x_ref.shape

    xp = xp_ref[0]                                            # (Hp, Wp*C)

    # --- BN1 (folded to scale/shift) + LeakyReLU(0.1) ---
    a = _leaky(xp * s1_ref[...] + t1_ref[...])

    # --- Conv1x1 (inplanes -> planes) with BN2 pre-folded, + LeakyReLU ---
    # block-diagonal matmul keeps the (row, width*channel) layout.
    row_ref[...] = _leaky(
        jnp.dot(a, w1_ref[...], preferred_element_type=jnp.float32)
        + b1_ref[...])                                        # (Hp, Wp*P)

    # --- Conv3x3 (VALID on the padded rows) with BN3 pre-folded ---
    # three static row-window matmuls against block-Toeplitz weight slabs;
    # accumulator initialized with first tap + bias (no zero-fill).
    acc = jnp.dot(row_ref[0:H, :], w3_ref[0],
                  preferred_element_type=jnp.float32) + b3_ref[...]
    acc = acc + jnp.dot(row_ref[1:H + 1, :], w3_ref[1],
                        preferred_element_type=jnp.float32)
    acc = acc + jnp.dot(row_ref[2:H + 2, :], w3_ref[2],
                        preferred_element_type=jnp.float32)   # (H, W*P)

    # --- LeakyReLU (BN3 already folded into the conv) ---
    g = _leaky(acc)

    # --- Conv1x1 (planes -> planes*4): block-diagonal matmul -> (H, W*C) ---
    out = jnp.dot(g, w4_ref[...], preferred_element_type=jnp.float32) + b4_ref[...]

    # --- residual add (downsample=None) + lane-dense (256-wide) store ---
    o_ref[0] = (out + x_ref[0]).astype(o_ref.dtype)


def bottleneck_forward(x_nchw, params):
    N, C, H, W = x_nchw.shape
    P = params["w1"].shape[1]
    assert C == 4 * P, "downsample=None requires inplanes == planes * expansion"
    Hp, Wp = H + 2, W + 2
    dt = x_nchw.dtype

    # NCHW (PyTorch) -> NHWC (channels on lanes)
    x = jnp.transpose(x_nchw, (0, 2, 3, 1))
    # Reflection pad the input once in the wrapper; the pointwise prefix
    # (BN1, LeakyReLU, Conv1x1, BN2, LeakyReLU) commutes with it.
    xp = jnp.pad(x, ((0, 0), (1, 1), (1, 1), (0, 0)), mode="reflect")
    x_flat = x.reshape(N, H, W * C)            # (N, 16, 256)  lane-dense
    xp_flat = xp.reshape(N, Hp, Wp * C)        # (N, 18, 288)

    # --- fold BN2 into conv1 and BN3 into conv3 (tiny weights, wrapper-side) --
    w1f = params["w1"] * params["s2"][None, :]                # (C, P)
    b1f = params["s2"] * params["b1"] + params["t2"]          # (P,)
    w3f = params["w3"] * params["s3"][None, None, None, :]    # (3,3,P,P) HWIO
    b3f = params["s3"] * params["b3"] + params["t3"]          # (P,)

    # --- fold tiny per-channel params into the (row, width*channel) layout ---
    s1t = jnp.tile(params["s1"], Wp)[None, :]                         # (1, Wp*C)
    t1t = jnp.tile(params["t1"], Wp)[None, :]
    bw1 = jnp.kron(jnp.eye(Wp, dtype=dt), w1f)                        # (Wp*C, Wp*P)
    b1t = jnp.tile(b1f, Wp)[None, :]                                  # (1, Wp*P)
    bw3 = jnp.stack([
        sum(jnp.kron(jnp.eye(Wp, W, k=-dj, dtype=dt), w3f[di, dj]) for dj in range(3))
        for di in range(3)
    ])                                                                # (3, Wp*P, W*P)
    b3t = jnp.tile(b3f, W)[None, :]                                   # (1, W*P)
    bw4 = jnp.kron(jnp.eye(W, dtype=dt), params["w4"])                # (W*P, W*C)
    b4t = jnp.tile(params["b4"], W)[None, :]                          # (1, W*C)

    res_args = (s1t, t1t, bw1, b1t, bw3, b3t, bw4, b4t)

    def _resident(a):
        nd = a.ndim
        return pl.BlockSpec(a.shape, lambda n, _nd=nd: (0,) * _nd)

    grid_spec = pltpu.PrefetchScalarGridSpec(
        num_scalar_prefetch=0,
        grid=(N,),
        in_specs=[
            pl.BlockSpec((1, Hp, Wp * C), lambda n: (n, 0, 0)),   # padded activations
            pl.BlockSpec((1, H, W * C), lambda n: (n, 0, 0)),     # residual
        ] + [_resident(a) for a in res_args],                     # resident params
        out_specs=pl.BlockSpec((1, H, W * C), lambda n: (n, 0, 0)),
        scratch_shapes=[pltpu.VMEM((Hp, Wp * P), jnp.float32)],
    )

    out_flat = pl.pallas_call(
        bottleneck_kernel,
        out_shape=jax.ShapeDtypeStruct((N, H, W * C), dt),
        grid_spec=grid_spec,
        compiler_params=pltpu.CompilerParams(
            dimension_semantics=("parallel",),        # megacore sharding
            vmem_limit_bytes=32 * 1024 * 1024,        # headroom on v7x 64MiB
        ),
    )(xp_flat, x_flat, *res_args)

    out = out_flat.reshape(N, H, W, C)
    return jnp.transpose(out, (0, 3, 1, 2))            # back to NCHW


def reference(x_nchw, p):
    # Pure-JAX reference (unfolded BN params, lax.conv for the 3x3).
    x = jnp.transpose(x_nchw, (0, 2, 3, 1))
    h = _leaky(x * p["s1"] + p["t1"])
    h = jnp.einsum("nhwc,cp->nhwp", h, p["w1"]) + p["b1"]
    h = _leaky(h * p["s2"] + p["t2"])
    hp = jnp.pad(h, ((0, 0), (1, 1), (1, 1), (0, 0)), mode="reflect")
    h = lax.conv_general_dilated(hp, p["w3"], (1, 1), "VALID",
                                 dimension_numbers=("NHWC", "HWIO", "NHWC"))
    h = h + p["b3"]
    h = _leaky(h * p["s3"] + p["t3"])
    h = jnp.einsum("nhwp,pc->nhwc", h, p["w4"]) + p["b4"]
    out = x + h
    return jnp.transpose(out, (0, 3, 1, 2))


def make_params(key, inplanes, planes):
    ks = jax.random.split(key, 9)

    def bn_fold(k, Cc):
        kg, kb, km, kv = jax.random.split(k, 4)
        gamma = 1.0 + 0.1 * jax.random.normal(kg, (Cc,), jnp.float32)
        beta = 0.1 * jax.random.normal(kb, (Cc,), jnp.float32)
        mean = 0.1 * jax.random.normal(km, (Cc,), jnp.float32)
        var = jnp.abs(jax.random.normal(kv, (Cc,), jnp.float32)) + 0.5
        scale = gamma / jnp.sqrt(var + 1e-5)
        shift = beta - mean * scale
        return scale, shift

    s1, t1 = bn_fold(ks[0], inplanes)
    s2, t2 = bn_fold(ks[1], planes)
    s3, t3 = bn_fold(ks[2], planes)

    w1 = 0.2 * jax.random.normal(ks[3], (inplanes, planes), jnp.float32)
    b1 = 0.1 * jax.random.normal(ks[4], (planes,), jnp.float32)
    w3 = 0.2 * jax.random.normal(ks[5], (3, 3, planes, planes), jnp.float32)  # HWIO
    b3 = 0.1 * jax.random.normal(ks[6], (planes,), jnp.float32)
    w4 = 0.2 * jax.random.normal(ks[7], (planes, planes * 4), jnp.float32)
    b4 = 0.1 * jax.random.normal(ks[8], (planes * 4,), jnp.float32)

    return dict(s1=s1, t1=t1, w1=w1, b1=b1, s2=s2, t2=t2,
                w3=w3, b3=b3, s3=s3, t3=t3, w4=w4, b4=b4)


if __name__ == "__main__":
    N, H, W = 2, 16, 16
    planes = 4
    inplanes = planes * 4      # required so the identity residual add is well-formed

    key = jax.random.PRNGKey(0)
    kx, kp = jax.random.split(key)
    x = jax.random.normal(kx, (N, inplanes, H, W), jnp.float32)   # NCHW like PyTorch
    params = make_params(kp, inplanes, planes)

    fwd = jax.jit(bottleneck_forward)
    out = fwd(x, params)
    out = jax.block_until_ready(out)

    ref = reference(x, params)
    assert out.shape == x.shape
    err = jnp.max(jnp.abs(out - ref))
    assert jnp.allclose(out, ref, atol=2e-4, rtol=2e-4), f"max err {err}"

    print("KERNEL_OK")
</pallas_src>

<mosaic_0001>
module attributes {stable_mosaic.version = 11 : i64} {
  func.func @bottleneck_kernel(%arg0: i32, %arg1: memref<1x18x288xf32, #tpu.memory_space<vmem>>, %arg2: memref<1x16x256xf32, #tpu.memory_space<vmem>>, %arg3: memref<1x288xf32, #tpu.memory_space<vmem>>, %arg4: memref<1x288xf32, #tpu.memory_space<vmem>>, %arg5: memref<288x72xf32, #tpu.memory_space<vmem>>, %arg6: memref<1x72xf32, #tpu.memory_space<vmem>>, %arg7: memref<3x72x64xf32, #tpu.memory_space<vmem>>, %arg8: memref<1x64xf32, #tpu.memory_space<vmem>>, %arg9: memref<64x256xf32, #tpu.memory_space<vmem>>, %arg10: memref<1x256xf32, #tpu.memory_space<vmem>>, %arg11: memref<1x16x256xf32, #tpu.memory_space<vmem>>, %arg12: memref<18x72xf32, #tpu.memory_space<vmem>>) attributes {dimension_semantics = [#tpu.dimension_semantics<parallel>], iteration_bounds = array<i64: 2>, scalar_prefetch = 0 : i64, scratch_operands = 1 : i64, tpu.core_type = #tpu.core_type<tc>, window_params = [{transform_indices = @transform_0, window_bounds = array<i64: 1, 18, 288>}, {transform_indices = @transform_1, window_bounds = array<i64: 1, 16, 256>}, {pipeline_mode = #tpu.pipeline_mode<synchronous>, transform_indices = @transform_2, window_bounds = array<i64: 1, 288>}, {pipeline_mode = #tpu.pipeline_mode<synchronous>, transform_indices = @transform_3, window_bounds = array<i64: 1, 288>}, {pipeline_mode = #tpu.pipeline_mode<synchronous>, transform_indices = @transform_4, window_bounds = array<i64: 288, 72>}, {pipeline_mode = #tpu.pipeline_mode<synchronous>, transform_indices = @transform_5, window_bounds = array<i64: 1, 72>}, {pipeline_mode = #tpu.pipeline_mode<synchronous>, transform_indices = @transform_6, window_bounds = array<i64: 3, 72, 64>}, {pipeline_mode = #tpu.pipeline_mode<synchronous>, transform_indices = @transform_7, window_bounds = array<i64: 1, 64>}, {pipeline_mode = #tpu.pipeline_mode<synchronous>, transform_indices = @transform_8, window_bounds = array<i64: 64, 256>}, {pipeline_mode = #tpu.pipeline_mode<synchronous>, transform_indices = @transform_9, window_bounds = array<i64: 1, 256>}, {transform_indices = @transform_10, window_bounds = array<i64: 1, 16, 256>}]} {
    %c0 = arith.constant 0 : index
    %c0_0 = arith.constant 0 : index
    %c0_1 = arith.constant 0 : index
    %0 = vector.load %arg1[%c0, %c0_0, %c0_1] : memref<1x18x288xf32, #tpu.memory_space<vmem>>, vector<1x18x288xf32>
    %1 = vector.shape_cast %0 : vector<1x18x288xf32> to vector<18x288xf32>
    %c0_2 = arith.constant 0 : index
    %c0_3 = arith.constant 0 : index
    %2 = vector.load %arg3[%c0_2, %c0_3] : memref<1x288xf32, #tpu.memory_space<vmem>>, vector<1x288xf32>
    %3 = vector.broadcast %2 : vector<1x288xf32> to vector<18x288xf32>
    %4 = arith.mulf %1, %3 : vector<18x288xf32>
    %c0_4 = arith.constant 0 : index
    %c0_5 = arith.constant 0 : index
    %5 = vector.load %arg4[%c0_4, %c0_5] : memref<1x288xf32, #tpu.memory_space<vmem>>, vector<1x288xf32>
    %6 = vector.broadcast %5 : vector<1x288xf32> to vector<18x288xf32>
    %7 = arith.addf %4, %6 : vector<18x288xf32>
    %cst = arith.constant 0.000000e+00 : f32
    %8 = vector.broadcast %cst : f32 to vector<18x288xf32>
    %9 = arith.cmpf ogt, %7, %8 : vector<18x288xf32>
    %cst_6 = arith.constant 1.000000e-01 : f32
    %10 = vector.broadcast %cst_6 : f32 to vector<18x288xf32>
    %11 = arith.mulf %10, %7 : vector<18x288xf32>
    %12 = arith.select %9, %7, %11 : vector<18x288xi1>, vector<18x288xf32>
    %c0_7 = arith.constant 0 : index
    %c0_8 = arith.constant 0 : index
    %13 = vector.load %arg5[%c0_7, %c0_8] : memref<288x72xf32, #tpu.memory_space<vmem>>, vector<288x72xf32>
    %cst_9 = arith.constant dense<0.000000e+00> : vector<18x72xf32>
    %14 = tpu.matmul %12, %13, %cst_9 {dimension_numbers = #tpu.dot_dimension_numbers<[1], [0], [0], [1], [0, 0, 1, 1], [], []>} : vector<18x288xf32>, vector<288x72xf32>, vector<18x72xf32> -> vector<18x72xf32>
    %c0_10 = arith.constant 0 : index
    %c0_11 = arith.constant 0 : index
    %15 = vector.load %arg6[%c0_10, %c0_11] : memref<1x72xf32, #tpu.memory_space<vmem>>, vector<1x72xf32>
    %16 = vector.broadcast %15 : vector<1x72xf32> to vector<18x72xf32>
    %17 = arith.addf %14, %16 : vector<18x72xf32>
    %cst_12 = arith.constant 0.000000e+00 : f32
    %18 = vector.broadcast %cst_12 : f32 to vector<18x72xf32>
    %19 = arith.cmpf ogt, %17, %18 : vector<18x72xf32>
    %cst_13 = arith.constant 1.000000e-01 : f32
    %20 = vector.broadcast %cst_13 : f32 to vector<18x72xf32>
    %21 = arith.mulf %20, %17 : vector<18x72xf32>
    %22 = arith.select %19, %17, %21 : vector<18x72xi1>, vector<18x72xf32>
    %c0_14 = arith.constant 0 : index
    %c0_15 = arith.constant 0 : index
    %23 = vector.load %arg12[%c0_14, %c0_15] : memref<18x72xf32, #tpu.memory_space<vmem>>, vector<18x72xf32>
    tpu.vector_store %arg12[%c0_14, %c0_15], %22 {strides = array<i32>} : memref<18x72xf32, #tpu.memory_space<vmem>>, vector<18x72xf32>,
    %c0_16 = arith.constant 0 : index
    %c0_17 = arith.constant 0 : index
    %24 = vector.load %arg12[%c0_16, %c0_17] : memref<18x72xf32, #tpu.memory_space<vmem>>, vector<16x72xf32>
    %c0_18 = arith.constant 0 : index
    %c0_19 = arith.constant 0 : index
    %c0_20 = arith.constant 0 : index
    %25 = vector.load %arg7[%c0_18, %c0_19, %c0_20] : memref<3x72x64xf32, #tpu.memory_space<vmem>>, vector<1x72x64xf32>
    %26 = vector.shape_cast %25 : vector<1x72x64xf32> to vector<72x64xf32>
    %cst_21 = arith.constant dense<0.000000e+00> : vector<16x64xf32>
    %27 = tpu.matmul %24, %26, %cst_21 {dimension_numbers = #tpu.dot_dimension_numbers<[1], [0], [0], [1], [0, 0, 1, 1], [], []>} : vector<16x72xf32>, vector<72x64xf32>, vector<16x64xf32> -> vector<16x64xf32>
    %c0_22 = arith.constant 0 : index
    %c0_23 = arith.constant 0 : index
    %28 = vector.load %arg8[%c0_22, %c0_23] : memref<1x64xf32, #tpu.memory_space<vmem>>, vector<1x64xf32>
    %29 = vector.broadcast %28 : vector<1x64xf32> to vector<16x64xf32>
    %30 = arith.addf %27, %29 : vector<16x64xf32>
    %c1 = arith.constant 1 : index
    %c0_24 = arith.constant 0 : index
    %31 = vector.load %arg12[%c1, %c0_24] : memref<18x72xf32, #tpu.memory_space<vmem>>, vector<16x72xf32>
    %c1_25 = arith.constant 1 : index
    %c0_26 = arith.constant 0 : index
    %c0_27 = arith.constant 0 : index
    %32 = vector.load %arg7[%c1_25, %c0_26, %c0_27] : memref<3x72x64xf32, #tpu.memory_space<vmem>>, vector<1x72x64xf32>
    %33 = vector.shape_cast %32 : vector<1x72x64xf32> to vector<72x64xf32>
    %cst_28 = arith.constant dense<0.000000e+00> : vector<16x64xf32>
    %34 = tpu.matmul %31, %33, %cst_28 {dimension_numbers = #tpu.dot_dimension_numbers<[1], [0], [0], [1], [0, 0, 1, 1], [], []>} : vector<16x72xf32>, vector<72x64xf32>, vector<16x64xf32> -> vector<16x64xf32>
    %35 = arith.addf %30, %34 : vector<16x64xf32>
    %c2 = arith.constant 2 : index
    %c0_29 = arith.constant 0 : index
    %36 = vector.load %arg12[%c2, %c0_29] : memref<18x72xf32, #tpu.memory_space<vmem>>, vector<16x72xf32>
    %c2_30 = arith.constant 2 : index
    %c0_31 = arith.constant 0 : index
    %c0_32 = arith.constant 0 : index
    %37 = vector.load %arg7[%c2_30, %c0_31, %c0_32] : memref<3x72x64xf32, #tpu.memory_space<vmem>>, vector<1x72x64xf32>
    %38 = vector.shape_cast %37 : vector<1x72x64xf32> to vector<72x64xf32>
    %cst_33 = arith.constant dense<0.000000e+00> : vector<16x64xf32>
    %39 = tpu.matmul %36, %38, %cst_33 {dimension_numbers = #tpu.dot_dimension_numbers<[1], [0], [0], [1], [0, 0, 1, 1], [], []>} : vector<16x72xf32>, vector<72x64xf32>, vector<16x64xf32> -> vector<16x64xf32>
    %40 = arith.addf %35, %39 : vector<16x64xf32>
    %cst_34 = arith.constant 0.000000e+00 : f32
    %41 = vector.broadcast %cst_34 : f32 to vector<16x64xf32>
    %42 = arith.cmpf ogt, %40, %41 : vector<16x64xf32>
    %cst_35 = arith.constant 1.000000e-01 : f32
    %43 = vector.broadcast %cst_35 : f32 to vector<16x64xf32>
    %44 = arith.mulf %43, %40 : vector<16x64xf32>
    %45 = arith.select %42, %40, %44 : vector<16x64xi1>, vector<16x64xf32>
    %c0_36 = arith.constant 0 : index
    %c0_37 = arith.constant 0 : index
    %46 = vector.load %arg9[%c0_36, %c0_37] : memref<64x256xf32, #tpu.memory_space<vmem>>, vector<64x256xf32>
    %cst_38 = arith.constant dense<0.000000e+00> : vector<16x256xf32>
    %47 = tpu.matmul %45, %46, %cst_38 {dimension_numbers = #tpu.dot_dimension_numbers<[1], [0], [0], [1], [0, 0, 1, 1], [], []>} : vector<16x64xf32>, vector<64x256xf32>, vector<16x256xf32> -> vector<16x256xf32>
    %c0_39 = arith.constant 0 : index
    %c0_40 = arith.constant 0 : index
    %48 = vector.load %arg10[%c0_39, %c0_40] : memref<1x256xf32, #tpu.memory_space<vmem>>, vector<1x256xf32>
    %49 = vector.broadcast %48 : vector<1x256xf32> to vector<16x256xf32>
    %50 = arith.addf %47, %49 : vector<16x256xf32>
    %c0_41 = arith.constant 0 : index
    %c0_42 = arith.constant 0 : index
    %c0_43 = arith.constant 0 : index
    %51 = vector.load %arg2[%c0_41, %c0_42, %c0_43] : memref<1x16x256xf32, #tpu.memory_space<vmem>>, vector<1x16x256xf32>
    %52 = vector.shape_cast %51 : vector<1x16x256xf32> to vector<16x256xf32>
    %53 = arith.addf %50, %52 : vector<16x256xf32>
    %c0_44 = arith.constant 0 : index
    %c0_45 = arith.constant 0 : index
    %c0_46 = arith.constant 0 : index
    %54 = vector.load %arg11[%c0_44, %c0_45, %c0_46] : memref<1x16x256xf32, #tpu.memory_space<vmem>>, vector<1x16x256xf32>
    %55 = vector.shape_cast %54 : vector<1x16x256xf32> to vector<16x256xf32>
    %56 = vector.shape_cast %53 : vector<16x256xf32> to vector<1x16x256xf32>
    tpu.vector_store %arg11[%c0_44, %c0_45, %c0_46], %56 {strides = array<i32>} : memref<1x16x256xf32, #tpu.memory_space<vmem>>, vector<1x16x256xf32>,
    return
  }
  func.func @transform_0(%arg0: i32) -> (i32, i32, i32) {
    %c0_i32 = arith.constant 0 : i32
    %c0_i32_0 = arith.constant 0 : i32
    %c0_i32_1 = arith.constant 0 : i32
    return %arg0, %c0_i32, %c0_i32_0 : i32, i32, i32
  }
  func.func @transform_1(%arg0: i32) -> (i32, i32, i32) {
    %c0_i32 = arith.constant 0 : i32
    %c0_i32_0 = arith.constant 0 : i32
    %c0_i32_1 = arith.constant 0 : i32
    return %arg0, %c0_i32, %c0_i32_0 : i32, i32, i32
  }
  func.func @transform_2(%arg0: i32) -> (i32, i32) {
    %c0_i32 = arith.constant 0 : i32
    %c0_i32_0 = arith.constant 0 : i32
    %c0_i32_1 = arith.constant 0 : i32
    return %c0_i32, %c0_i32_0 : i32, i32
  }
  func.func @transform_3(%arg0: i32) -> (i32, i32) {
    %c0_i32 = arith.constant 0 : i32
    %c0_i32_0 = arith.constant 0 : i32
    %c0_i32_1 = arith.constant 0 : i32
    return %c0_i32, %c0_i32_0 : i32, i32
  }
  func.func @transform_4(%arg0: i32) -> (i32, i32) {
    %c0_i32 = arith.constant 0 : i32
    %c0_i32_0 = arith.constant 0 : i32
    %c0_i32_1 = arith.constant 0 : i32
    return %c0_i32, %c0_i32_0 : i32, i32
  }
  func.func @transform_5(%arg0: i32) -> (i32, i32) {
    %c0_i32 = arith.constant 0 : i32
    %c0_i32_0 = arith.constant 0 : i32
    %c0_i32_1 = arith.constant 0 : i32
    return %c0_i32, %c0_i32_0 : i32, i32
  }
  func.func @transform_6(%arg0: i32) -> (i32, i32, i32) {
    %c0_i32 = arith.constant 0 : i32
    %c0_i32_0 = arith.constant 0 : i32
    %c0_i32_1 = arith.constant 0 : i32
    %c0_i32_2 = arith.constant 0 : i32
    return %c0_i32, %c0_i32_0, %c0_i32_1 : i32, i32, i32
  }
  func.func @transform_7(%arg0: i32) -> (i32, i32) {
    %c0_i32 = arith.constant 0 : i32
    %c0_i32_0 = arith.constant 0 : i32
    %c0_i32_1 = arith.constant 0 : i32
    return %c0_i32, %c0_i32_0 : i32, i32
  }
  func.func @transform_8(%arg0: i32) -> (i32, i32) {
    %c0_i32 = arith.constant 0 : i32
    %c0_i32_0 = arith.constant 0 : i32
    %c0_i32_1 = arith.constant 0 : i32
    return %c0_i32, %c0_i32_0 : i32, i32
  }
  func.func @transform_9(%arg0: i32) -> (i32, i32) {
    %c0_i32 = arith.constant 0 : i32
    %c0_i32_0 = arith.constant 0 : i32
    %c0_i32_1 = arith.constant 0 : i32
    return %c0_i32, %c0_i32_0 : i32, i32
  }
  func.func @transform_10(%arg0: i32) -> (i32, i32, i32) {
    %c0_i32 = arith.constant 0 : i32
    %c0_i32_0 = arith.constant 0 : i32
    %c0_i32_1 = arith.constant 0 : i32
    return %arg0, %c0_i32, %c0_i32_0 : i32, i32, i32
  }
}

</mosaic_0001>

<llo_original>
// kernel: tile.28
$region0: #{tile.28}
  #allocation0 [shape = 's32[1]{0}', space=sflag, size = 0x4, scoped, tag = 'scoped memory for tile.28']
  %s0 = inlined_call_operand.vmem [shape: f32[16], index: 0, kind: input, shape index: {}]
  %s1 = inlined_call_operand.vmem [shape: f32[18,16], index: 1, kind: output, shape index: {}]
  // Predicated region
  $region2: #{tile.28} parent=0 // pred_check
    _
  $region3: #{tile.28} parent=0 // pred_check_branch
    %3 = sbr.rel (0) target = $region5
  $region4: #{tile.28} parent=0 // pred_region
    _
  $region5: #{tile.28} parent=0 // pred_fallthru
    _
  %v4 = vld [vmem:[%s0] ss:$0 sm:$0xff]
  %5 = vst [vmem:[%s1] sm:$0xff] %v4
  %s6 = scalar_lea.vmem %s1, 8
  %7 = vst [vmem:[%s6] sm:$0xff] %v4
  %s8 = scalar_lea.vmem %s1, 16
  %9 = vst [vmem:[%s8] sm:$0xff] %v4

// kernel: tile.29
$region0: #{tile.29}
  %s0 = inlined_call_operand.vmem [shape: f32[18,16], index: 0, kind: input, shape index: {}]
  %s1 = inlined_call_operand.vmem [shape: f32[1,288], index: 1, kind: output, shape index: {}]
  $region1: #{tile.29} parent=0
    #allocation0 [shape = 'u8[12288]{0}', space=vmem, size = 0x3000, scoped, tag = 'scoped mem for output reshape']
    %v2 = vld [vmem:[%s0] ss:$8 sm:$0x7]
    %vm3 = vcmask 130048
    %4 = vst.msk [vmem:[#allocation0] ss:$8 sm:$0x7] %vm3, %v2
    %s5 = scalar_lea.vmem %s0, 7
    %s6 = smov 3
    %v7 = vld [vmem:[%s5] ss:$8 sm:%s6]
    %8 = vrot.lane.b32.xlu0 %v7, 112
    %v9 = vpop.permute.xlu0 %8
    %vm10 = vcmask 1048448
    %11 = vst.msk [vmem:[#allocation0] ss:$8 sm:$0x3] %vm10, %v9
    %s12 = scalar_lea.vmem %s0, 6
    %s13 = smov 3
    %v14 = vld [vmem:[%s12] ss:$8 sm:%s13]
    %15 = vrot.lane.b32.xlu0 %v14, 96
    %v16 = vpop.permute.xlu0 %15
    %vm17 = vcmask 917248
    %18 = vst.msk [vmem:[#allocation0] ss:$8 sm:$0x3] %vm17, %v16
    %s19 = scalar_lea.vmem %s0, 5
    %s20 = smov 3
    %v21 = vld [vmem:[%s19] ss:$8 sm:%s20]
    %22 = vrot.lane.b32.xlu0 %v21, 80
    %v23 = vpop.permute.xlu0 %22
    %vm24 = vcmask 786048
    %25 = vst.msk [vmem:[#allocation0] ss:$8 sm:$0x3] %vm24, %v23
    %s26 = scalar_lea.vmem %s0, 4
    %s27 = smov 3
    %v28 = vld [vmem:[%s26] ss:$8 sm:%s27]
    %29 = vrot.lane.b32.xlu0 %v28, 64
    %v30 = vpop.permute.xlu0 %29
    %vm31 = vcmask 654848
    %32 = vst.msk [vmem:[#allocation0] ss:$8 sm:$0x3] %vm31, %v30
    %s33 = scalar_lea.vmem %s0, 3
    %s34 = smov 3
    %v35 = vld [vmem:[%s33] ss:$8 sm:%s34]
    %36 = vrot.lane.b32.xlu0 %v35, 48
    %v37 = vpop.permute.xlu0 %36
    %vm38 = vcmask 523648
    %39 = vst.msk [vmem:[#allocation0] ss:$8 sm:$0x3] %vm38, %v37
    %s40 = scalar_lea.vmem %s0, 2
    %s41 = smov 3
    %v42 = vld [vmem:[%s40] ss:$8 sm:%s41]
    %43 = vrot.lane.b32.xlu0 %v42, 32
    %v44 = vpop.permute.xlu0 %43
    %vm45 = vcmask 392448
    %46 = vst.msk [vmem:[#allocation0] ss:$8 sm:$0x3] %vm45, %v44
    %s47 = scalar_lea.vmem %s0, 1
    %v48 = vld [vmem:[%s47] ss:$8 sm:$0x7]
    %49 = vrot.lane.b32.xlu0 %v48, 16
    %v50 = vpop.permute.xlu0 %49
    %vm51 = vcmask 261248
    %52 = vst.msk [vmem:[#allocation0] ss:$8 sm:$0x7] %vm51, %v50
    %s54 = sshllo.u32 0, 1
    %v56 = vld [vmem:[#allocation0] sm:%s54]
    %s57 = sshllo.u32 0, 1
    %58 = vst [vmem:[%s1] sm:%s57] %v56
    %s59 = scalar_lea.vmem [#allocation0], 8
    %v60 = vld [vmem:[%s59] sm:%s54]
    %s61 = sshllo.u32 0, 1
    %s62 = scalar_lea.vmem %s1, 1
    %63 = vst [vmem:[%s62] sm:%s61] %v60
    %s64 = scalar_lea.vmem [#allocation0], 16
    %v65 = vld [vmem:[%s64] sm:%s54]
    %s66 = sshllo.u32 0, 1
    %s67 = smul.addr 1, 2
    %s68 = scalar_lea.vmem %s1, %s67
    %69 = vst [vmem:[%s68] sm:%s66] %v65

// kernel: tile.38
$region0: #{tile.38}
  #allocation0 [shape = 's32[1]{0}', space=sflag, size = 0x4, scoped, tag = 'scoped memory for tile.38']
  %s0 = inlined_call_operand.vmem [shape: f32[4], index: 0, kind: input, shape index: {}]
  %s1 = inlined_call_operand.vmem [shape: f32[18,4], index: 1, kind: output, shape index: {}]
  // Predicated region
  $region2: #{tile.38} parent=0 // pred_check
    _
  $region3: #{tile.38} parent=0 // pred_check_branch
    %3 = sbr.rel (0) target = $region5
  $region4: #{tile.38} parent=0 // pred_region
    _
  $region5: #{tile.38} parent=0 // pred_fallthru
    _
  %v4 = vld [vmem:[%s0] ss:$0 sm:$0xff]
  %5 = vst [vmem:[%s1] sm:$0xff] %v4
  %s6 = scalar_lea.vmem %s1, 8
  %7 = vst [vmem:[%s6] sm:$0xff] %v4
  %s8 = scalar_lea.vmem %s1, 16
  %9 = vst [vmem:[%s8] sm:$0xff] %v4

// kernel: tile.39
$region0: #{tile.39}
  %s0 = inlined_call_operand.vmem [shape: f32[18,4], index: 0, kind: input, shape index: {}]
  %s1 = inlined_call_operand.vmem [shape: f32[1,72], index: 1, kind: output, shape index: {}]
  $region1: #{tile.39} parent=0
    #allocation0 [shape = 'u8[4096]{0}', space=vmem, size = 0x1000, scoped, tag = 'scoped mem for output reshape']
    %v2 = vld [vmem:[%s0] sm:$0x1]
    %vm3 = vcmask 31744
    %4 = vst.msk [vmem:[#allocation0] sm:$0x1] %vm3, %v2
    %s5 = scalar_lea.vmem %s0, 17
    %v6 = vld [vmem:[%s5] sm:$0x1]
    %7 = vrot.lane.b32.xlu0 %v6, 68
    %v8 = vpop.permute.xlu0 %7
    %vm9 = vcmask 589344
    %10 = vst.msk [vmem:[#allocation0] sm:$0x1] %vm9, %v8
    %s11 = scalar_lea.vmem %s0, 16
    %v12 = vld [vmem:[%s11] sm:$0x1]
    %13 = vrot.lane.b32.xlu0 %v12, 64
    %v14 = vpop.permute.xlu0 %13
    %vm15 = vcmask 556544
    %16 = vst.msk [vmem:[#allocation0] sm:$0x1] %vm15, %v14
    %s17 = scalar_lea.vmem %s0, 15
    %v18 = vld [vmem:[%s17] sm:$0x1]
    %19 = vrot.lane.b32.xlu0 %v18, 60
    %v20 = vpop.permute.xlu0 %19
    %vm21 = vcmask 523744
    %22 = vst.msk [vmem:[#allocation0] sm:$0x1] %vm21, %v20
    %s23 = scalar_lea.vmem %s0, 14
    %v24 = vld [vmem:[%s23] sm:$0x1]
    %25 = vrot.lane.b32.xlu0 %v24, 56
    %v26 = vpop.permute.xlu0 %25
    %vm27 = vcmask 490944
    %28 = vst.msk [vmem:[#allocation0] sm:$0x1] %vm27, %v26
    %s29 = scalar_lea.vmem %s0, 13
    %v30 = vld [vmem:[%s29] sm:$0x1]
    %31 = vrot.lane.b32.xlu0 %v30, 52
    %v32 = vpop.permute.xlu0 %31
    %vm33 = vcmask 458144
    %34 = vst.msk [vmem:[#allocation0] sm:$0x1] %vm33, %v32
    %s35 = scalar_lea.vmem %s0, 12
    %v36 = vld [vmem:[%s35] sm:$0x1]
    %37 = vrot.lane.b32.xlu0 %v36, 48
    %v38 = vpop.permute.xlu0 %37
    %vm39 = vcmask 425344
    %40 = vst.msk [vmem:[#allocation0] sm:$0x1] %vm39, %v38
    %s41 = scalar_lea.vmem %s0, 11
    %v42 = vld [vmem:[%s41] sm:$0x1]
    %43 = vrot.lane.b32.xlu0 %v42, 44
    %v44 = vpop.permute.xlu0 %43
    %vm45 = vcmask 392544
    %46 = vst.msk [vmem:[#allocation0] sm:$0x1] %vm45, %v44
    %s47 = scalar_lea.vmem %s0, 10
    %v48 = vld [vmem:[%s47] sm:$0x1]
    %49 = vrot.lane.b32.xlu0 %v48, 40
    %v50 = vpop.permute.xlu0 %49
    %vm51 = vcmask 359744
    %52 = vst.msk [vmem:[#allocation0] sm:$0x1] %vm51, %v50
    %s53 = scalar_lea.vmem %s0, 9
    %v54 = vld [vmem:[%s53] sm:$0x1]
    %55 = vrot.lane.b32.xlu0 %v54, 36
    %v56 = vpop.permute.xlu0 %55
    %vm57 = vcmask 326944
    %58 = vst.msk [vmem:[#allocation0] sm:$0x1] %vm57, %v56
    %s59 = scalar_lea.vmem %s0, 8
    %v60 = vld [vmem:[%s59] sm:$0x1]
    %61 = vrot.lane.b32.xlu0 %v60, 32
    %v62 = vpop.permute.xlu0 %61
    %vm63 = vcmask 294144
    %64 = vst.msk [vmem:[#allocation0] sm:$0x1] %vm63, %v62
    %s65 = scalar_lea.vmem %s0, 7
    %v66 = vld [vmem:[%s65] sm:$0x1]
    %67 = vrot.lane.b32.xlu0 %v66, 28
    %v68 = vpop.permute.xlu0 %67
    %vm69 = vcmask 261344
    %70 = vst.msk [vmem:[#allocation0] sm:$0x1] %vm69, %v68
    %s71 = scalar_lea.vmem %s0, 6
    %v72 = vld [vmem:[%s71] sm:$0x1]
    %73 = vrot.lane.b32.xlu0 %v72, 24
    %v74 = vpop.permute.xlu0 %73
    %vm75 = vcmask 228544
    %76 = vst.msk [vmem:[#allocation0] sm:$0x1] %vm75, %v74
    %s77 = scalar_lea.vmem %s0, 5
    %v78 = vld [vmem:[%s77] sm:$0x1]
    %79 = vrot.lane.b32.xlu0 %v78, 20
    %v80 = vpop.permute.xlu0 %79
    %vm81 = vcmask 195744
    %82 = vst.msk [vmem:[#allocation0] sm:$0x1] %vm81, %v80
    %s83 = scalar_lea.vmem %s0, 4
    %v84 = vld [vmem:[%s83] sm:$0x1]
    %85 = vrot.lane.b32.xlu0 %v84, 16
    %v86 = vpop.permute.xlu0 %85
    %vm87 = vcmask 162944
    %88 = vst.msk [vmem:[#allocation0] sm:$0x1] %vm87, %v86
    %s89 = scalar_lea.vmem %s0, 3
    %v90 = vld [vmem:[%s89] sm:$0x1]
    %91 = vrot.lane.b32.xlu0 %v90, 12
    %v92 = vpop.permute.xlu0 %91
    %vm93 = vcmask 130144
    %94 = vst.msk [vmem:[#allocation0] sm:$0x1] %vm93, %v92
    %s95 = scalar_lea.vmem %s0, 2
    %v96 = vld [vmem:[%s95] sm:$0x1]
    %97 = vrot.lane.b32.xlu0 %v96, 8
    %v98 = vpop.permute.xlu0 %97
    %vm99 = vcmask 97344
    %100 = vst.msk [vmem:[#allocation0] sm:$0x1] %vm99, %v98
    %s101 = scalar_lea.vmem %s0, 1
    %v102 = vld [vmem:[%s101] sm:$0x1]
    %103 = vrot.lane.b32.xlu0 %v102, 4
    %v104 = vpop.permute.xlu0 %103
    %vm105 = vcmask 64544
    %106 = vst.msk [vmem:[#allocation0] sm:$0x1] %vm105, %v104
    %s108 = sshllo.u32 0, 1
    %v110 = vld [vmem:[#allocation0] sm:%s108]
    %s111 = sshllo.u32 0, 1
    %112 = vst [vmem:[%s1] sm:%s111] %v110

// kernel: tile.43
$region0: #{tile.43}
  #allocation0 [shape = 's32[1]{0}', space=sflag, size = 0x4, scoped, tag = 'scoped memory for tile.43']
  %s0 = inlined_call_operand.vmem [shape: f32[4], index: 0, kind: input, shape index: {}]
  %s1 = inlined_call_operand.vmem [shape: f32[16,4], index: 1, kind: output, shape index: {}]
  // Predicated region
  $region2: #{tile.43} parent=0 // pred_check
    _
  $region3: #{tile.43} parent=0 // pred_check_branch
    %3 = sbr.rel (0) target = $region5
  $region4: #{tile.43} parent=0 // pred_region
    _
  $region5: #{tile.43} parent=0 // pred_fallthru
    _
  %v4 = vld [vmem:[%s0] ss:$0 sm:$0xff]
  %5 = vst [vmem:[%s1] sm:$0xff] %v4
  %s6 = scalar_lea.vmem %s1, 8
  %7 = vst [vmem:[%s6] sm:$0xff] %v4

// kernel: tile.44
$region0: #{tile.44}
  %s0 = inlined_call_operand.vmem [shape: f32[16,4], index: 0, kind: input, shape index: {}]
  %s1 = inlined_call_operand.vmem [shape: f32[1,64], index: 1, kind: output, shape index: {}]
  $region1: #{tile.44} parent=0
    #allocation0 [shape = 'u8[4096]{0}', space=vmem, size = 0x1000, scoped, tag = 'scoped mem for output reshape']
    %v2 = vld [vmem:[%s0] sm:$0x1]
    %vm3 = vcmask 31744
    %4 = vst.msk [vmem:[#allocation0] sm:$0x1] %vm3, %v2
    %s5 = scalar_lea.vmem %s0, 15
    %v6 = vld [vmem:[%s5] sm:$0x1]
    %7 = vrot.lane.b32.xlu0 %v6, 60
    %v8 = vpop.permute.xlu0 %7
    %vm9 = vcmask 523744
    %10 = vst.msk [vmem:[#allocation0] sm:$0x1] %vm9, %v8
    %s11 = scalar_lea.vmem %s0, 14
    %v12 = vld [vmem:[%s11] sm:$0x1]
    %13 = vrot.lane.b32.xlu0 %v12, 56
    %v14 = vpop.permute.xlu0 %13
    %vm15 = vcmask 490944
    %16 = vst.msk [vmem:[#allocation0] sm:$0x1] %vm15, %v14
    %s17 = scalar_lea.vmem %s0, 13
    %v18 = vld [vmem:[%s17] sm:$0x1]
    %19 = vrot.lane.b32.xlu0 %v18, 52
    %v20 = vpop.permute.xlu0 %19
    %vm21 = vcmask 458144
    %22 = vst.msk [vmem:[#allocation0] sm:$0x1] %vm21, %v20
    %s23 = scalar_lea.vmem %s0, 12
    %v24 = vld [vmem:[%s23] sm:$0x1]
    %25 = vrot.lane.b32.xlu0 %v24, 48
    %v26 = vpop.permute.xlu0 %25
    %vm27 = vcmask 425344
    %28 = vst.msk [vmem:[#allocation0] sm:$0x1] %vm27, %v26
    %s29 = scalar_lea.vmem %s0, 11
    %v30 = vld [vmem:[%s29] sm:$0x1]
    %31 = vrot.lane.b32.xlu0 %v30, 44
    %v32 = vpop.permute.xlu0 %31
    %vm33 = vcmask 392544
    %34 = vst.msk [vmem:[#allocation0] sm:$0x1] %vm33, %v32
    %s35 = scalar_lea.vmem %s0, 10
    %v36 = vld [vmem:[%s35] sm:$0x1]
    %37 = vrot.lane.b32.xlu0 %v36, 40
    %v38 = vpop.permute.xlu0 %37
    %vm39 = vcmask 359744
    %40 = vst.msk [vmem:[#allocation0] sm:$0x1] %vm39, %v38
    %s41 = scalar_lea.vmem %s0, 9
    %v42 = vld [vmem:[%s41] sm:$0x1]
    %43 = vrot.lane.b32.xlu0 %v42, 36
    %v44 = vpop.permute.xlu0 %43
    %vm45 = vcmask 326944
    %46 = vst.msk [vmem:[#allocation0] sm:$0x1] %vm45, %v44
    %s47 = scalar_lea.vmem %s0, 8
    %v48 = vld [vmem:[%s47] sm:$0x1]
    %49 = vrot.lane.b32.xlu0 %v48, 32
    %v50 = vpop.permute.xlu0 %49
    %vm51 = vcmask 294144
    %52 = vst.msk [vmem:[#allocation0] sm:$0x1] %vm51, %v50
    %s53 = scalar_lea.vmem %s0, 7
    %v54 = vld [vmem:[%s53] sm:$0x1]
    %55 = vrot.lane.b32.xlu0 %v54, 28
    %v56 = vpop.permute.xlu0 %55
    %vm57 = vcmask 261344
    %58 = vst.msk [vmem:[#allocation0] sm:$0x1] %vm57, %v56
    %s59 = scalar_lea.vmem %s0, 6
    %v60 = vld [vmem:[%s59] sm:$0x1]
    %61 = vrot.lane.b32.xlu0 %v60, 24
    %v62 = vpop.permute.xlu0 %61
    %vm63 = vcmask 228544
    %64 = vst.msk [vmem:[#allocation0] sm:$0x1] %vm63, %v62
    %s65 = scalar_lea.vmem %s0, 5
    %v66 = vld [vmem:[%s65] sm:$0x1]
    %67 = vrot.lane.b32.xlu0 %v66, 20
    %v68 = vpop.permute.xlu0 %67
    %vm69 = vcmask 195744
    %70 = vst.msk [vmem:[#allocation0] sm:$0x1] %vm69, %v68
    %s71 = scalar_lea.vmem %s0, 4
    %v72 = vld [vmem:[%s71] sm:$0x1]
    %73 = vrot.lane.b32.xlu0 %v72, 16
    %v74 = vpop.permute.xlu0 %73
    %vm75 = vcmask 162944
    %76 = vst.msk [vmem:[#allocation0] sm:$0x1] %vm75, %v74
    %s77 = scalar_lea.vmem %s0, 3
    %v78 = vld [vmem:[%s77] sm:$0x1]
    %79 = vrot.lane.b32.xlu0 %v78, 12
    %v80 = vpop.permute.xlu0 %79
    %vm81 = vcmask 130144
    %82 = vst.msk [vmem:[#allocation0] sm:$0x1] %vm81, %v80
    %s83 = scalar_lea.vmem %s0, 2
    %v84 = vld [vmem:[%s83] sm:$0x1]
    %85 = vrot.lane.b32.xlu0 %v84, 8
    %v86 = vpop.permute.xlu0 %85
    %vm87 = vcmask 97344
    %88 = vst.msk [vmem:[#allocation0] sm:$0x1] %vm87, %v86
    %s89 = scalar_lea.vmem %s0, 1
    %v90 = vld [vmem:[%s89] sm:$0x1]
    %91 = vrot.lane.b32.xlu0 %v90, 4
    %v92 = vpop.permute.xlu0 %91
    %vm93 = vcmask 64544
    %94 = vst.msk [vmem:[#allocation0] sm:$0x1] %vm93, %v92
    %s96 = sshllo.u32 0, 1
    %v98 = vld [vmem:[#allocation0] sm:%s96]
    %s99 = sshllo.u32 0, 1
    %100 = vst [vmem:[%s1] sm:%s99] %v98

// kernel: tile.48
$region0: #{tile.48}
  #allocation0 [shape = 's32[1]{0}', space=sflag, size = 0x4, scoped, tag = 'scoped memory for tile.48']
  %s0 = inlined_call_operand.vmem [shape: f32[16], index: 0, kind: input, shape index: {}]
  %s1 = inlined_call_operand.vmem [shape: f32[16,16], index: 1, kind: output, shape index: {}]
  // Predicated region
  $region2: #{tile.48} parent=0 // pred_check
    _
  $region3: #{tile.48} parent=0 // pred_check_branch
    %3 = sbr.rel (0) target = $region5
  $region4: #{tile.48} parent=0 // pred_region
    _
  $region5: #{tile.48} parent=0 // pred_fallthru
    _
  %v4 = vld [vmem:[%s0] ss:$0 sm:$0xff]
  %5 = vst [vmem:[%s1] sm:$0xff] %v4
  %s6 = scalar_lea.vmem %s1, 8
  %7 = vst [vmem:[%s6] sm:$0xff] %v4

// kernel: tile.49
$region0: #{tile.49}
  %s0 = inlined_call_operand.vmem [shape: f32[16,16], index: 0, kind: input, shape index: {}]
  %s1 = inlined_call_operand.vmem [shape: f32[1,256], index: 1, kind: output, shape index: {}]
  $region1: #{tile.49} parent=0
    #allocation0 [shape = 'u8[8192]{0}', space=vmem, size = 0x2000, scoped, tag = 'scoped mem for output reshape']
    %s2 = smov 3
    %v3 = vld [vmem:[%s0] ss:$8 sm:%s2]
    %vm4 = vcmask 130048
    %5 = vst.msk [vmem:[#allocation0] ss:$8 sm:$0x3] %vm4, %v3
    %s6 = scalar_lea.vmem %s0, 7
    %s7 = smov 3
    %v8 = vld [vmem:[%s6] ss:$8 sm:%s7]
    %9 = vrot.lane.b32.xlu0 %v8, 112
    %v10 = vpop.permute.xlu0 %9
    %vm11 = vcmask 1048448
    %12 = vst.msk [vmem:[#allocation0] ss:$8 sm:$0x3] %vm11, %v10
    %s13 = scalar_lea.vmem %s0, 6
    %s14 = smov 3
    %v15 = vld [vmem:[%s13] ss:$8 sm:%s14]
    %16 = vrot.lane.b32.xlu0 %v15, 96
    %v17 = vpop.permute.xlu0 %16
    %vm18 = vcmask 917248
    %19 = vst.msk [vmem:[#allocation0] ss:$8 sm:$0x3] %vm18, %v17
    %s20 = scalar_lea.vmem %s0, 5
    %s21 = smov 3
    %v22 = vld [vmem:[%s20] ss:$8 sm:%s21]
    %23 = vrot.lane.b32.xlu0 %v22, 80
    %v24 = vpop.permute.xlu0 %23
    %vm25 = vcmask 786048
    %26 = vst.msk [vmem:[#allocation0] ss:$8 sm:$0x3] %vm25, %v24
    %s27 = scalar_lea.vmem %s0, 4
    %s28 = smov 3
    %v29 = vld [vmem:[%s27] ss:$8 sm:%s28]
    %30 = vrot.lane.b32.xlu0 %v29, 64
    %v31 = vpop.permute.xlu0 %30
    %vm32 = vcmask 654848
    %33 = vst.msk [vmem:[#allocation0] ss:$8 sm:$0x3] %vm32, %v31
    %s34 = scalar_lea.vmem %s0, 3
    %s35 = smov 3
    %v36 = vld [vmem:[%s34] ss:$8 sm:%s35]
    %37 = vrot.lane.b32.xlu0 %v36, 48
    %v38 = vpop.permute.xlu0 %37
    %vm39 = vcmask 523648
    %40 = vst.msk [vmem:[#allocation0] ss:$8 sm:$0x3] %vm39, %v38
    %s41 = scalar_lea.vmem %s0, 2
    %s42 = smov 3
    %v43 = vld [vmem:[%s41] ss:$8 sm:%s42]
    %44 = vrot.lane.b32.xlu0 %v43, 32
    %v45 = vpop.permute.xlu0 %44
    %vm46 = vcmask 392448
    %47 = vst.msk [vmem:[#allocation0] ss:$8 sm:$0x3] %vm46, %v45
    %s48 = scalar_lea.vmem %s0, 1
    %s49 = smov 3
    %v50 = vld [vmem:[%s48] ss:$8 sm:%s49]
    %51 = vrot.lane.b32.xlu0 %v50, 16
    %v52 = vpop.permute.xlu0 %51
    %vm53 = vcmask 261248
    %54 = vst.msk [vmem:[#allocation0] ss:$8 sm:$0x3] %vm53, %v52
    %s56 = sshllo.u32 0, 1
    %v58 = vld [vmem:[#allocation0] sm:%s56]
    %s59 = sshllo.u32 0, 1
    %60 = vst [vmem:[%s1] sm:%s59] %v58
    %s61 = scalar_lea.vmem [#allocation0], 8
    %v62 = vld [vmem:[%s61] sm:%s56]
    %s63 = sshllo.u32 0, 1
    %s64 = scalar_lea.vmem %s1, 1
    %65 = vst [vmem:[%s64] sm:%s63] %v62

// kernel: bottleneck_forward.1
$region0: #{bottleneck_forward.1}
  #allocation0 [shape = 'u32[]', space=smem, size = 0x4, offset = 0x4, fixed_abs, tag = 'smem constant byte address 0x4 - core index']
  #allocation1 [shape = 'u32[144,128]{1,0:T(1,128)}', space=vmem, size = 0x12000, scoped, tag = 'internal scratch']
  #allocation2 [shape = 'f32[18,72]{1,0:T(8,128)}', space=vmem, size = 0x3000, scoped, tag = 'scratch operand']
  %s0 = inlined_call_operand.vmem [shape: f32[2,18,288], index: 0, kind: input, shape index: {}]
  %s1 = inlined_call_operand.vmem [shape: f32[2,16,256], index: 1, kind: input, shape index: {}]
  %s2 = inlined_call_operand.vmem [shape: f32[1,288], index: 2, kind: input, shape index: {}]
  %s3 = inlined_call_operand.vmem [shape: f32[1,288], index: 3, kind: input, shape index: {}]
  %s4 = inlined_call_operand.vmem [shape: f32[288,72], index: 4, kind: input, shape index: {}]
  %s5 = inlined_call_operand.vmem [shape: f32[1,72], index: 5, kind: input, shape index: {}]
  %s6 = inlined_call_operand.vmem [shape: f32[3,72,64], index: 6, kind: input, shape index: {}]
  %s7 = inlined_call_operand.vmem [shape: f32[1,64], index: 7, kind: input, shape index: {}]
  %s8 = inlined_call_operand.vmem [shape: f32[64,256], index: 8, kind: input, shape index: {}]
  %s9 = inlined_call_operand.vmem [shape: f32[1,256], index: 9, kind: input, shape index: {}]
  %s10 = inlined_call_operand.vmem [shape: f32[2,16,256], index: 10, kind: output, shape index: {}]
  %s11 = sld [smem:[#allocation0]]
  $region73: #{bottleneck_forward.1} parent=0
    _
  %s13 = ssub.s32 1, %s11
  %s14 = scalar_select 0, %s13, %s11
  loop: start=0, step=1, limit=4
  $region2: #{bottleneck_forward.1} parent=0 // loop_pre_header
    _
  $region3: #{bottleneck_forward.1} parent=0 // loop_header
    %s16 = sphi 0, %s20
    %p17 = scmp.ge.s32.totalorder %s16, 4
    %s26 = sphi 0, %s28
    %s29 = sphi 0, %s26
    %s30 = sphi 0, %s29
    %s46 = sphi 0, %s30
    %s52 = sphi 0, %s54
    %s55 = sphi 0, %s52
    %s56 = sphi 0, %s55
    %s72 = sphi 0, %s56
    %s76 = sphi 0, %s76
    %s78 = sphi 0, %s76
    %s79 = sphi 0, %s78
    %s93 = sphi 0, %s79
    %s97 = sphi 0, %s97
    %s99 = sphi 0, %s97
    %s100 = sphi 0, %s99
    %s114 = sphi 0, %s100
    %s118 = sphi 0, %s118
    %s120 = sphi 0, %s118
    %s121 = sphi 0, %s120
    %s135 = sphi 0, %s121
    %s139 = sphi 0, %s139
    %s141 = sphi 0, %s139
    %s142 = sphi 0, %s141
    %s156 = sphi 0, %s142
    %s160 = sphi 0, %s160
    %s162 = sphi 0, %s160
    %s163 = sphi 0, %s162
    %s177 = sphi 0, %s163
    %s181 = sphi 0, %s181
    %s183 = sphi 0, %s181
    %s184 = sphi 0, %s183
    %s198 = sphi 0, %s184
    %s202 = sphi 0, %s202
    %s204 = sphi 0, %s202
    %s205 = sphi 0, %s204
    %s219 = sphi 0, %s205
    %s223 = sphi 0, %s223
    %s225 = sphi 0, %s223
    %s226 = sphi 0, %s225
    %s240 = sphi 0, %s226
    %s246 = sphi 0, %s248
    %s249 = sphi 0, %s246
    %s250 = sphi 0, %s249
    %s266 = sphi 0, %s250
  $region4: #{bottleneck_forward.1} parent=0 // loop_header_branch
    %19 = sbr.rel (%p17) target = $region8
  $region5: #{bottleneck_forward.1} parent=0 // loop_body
    %s21 = ssub.s32 %s16, 1
    %s22 = ssub.s32 %s16, 2
    %s23 = sadd.s32 %s16, 1
    %s24 = ssub.s32 %s16, %s23
    %p25 = scmp.eq.s32.totalorder %s24, 0
    %s27 = sadd.s32 %s26, 1
    %s28 = scalar_select %p25, %s26, %s27
    %p31 = pneg %p25
    %p32 = scmp.eq.s32.totalorder %s16, 1
    %p33 = por %p31, %p32
    %p34 = scmp.ne.s32.totalorder %s26, %s29
    %p35 = scmp.eq.s32.totalorder %s16, 0
    %p36 = por %p34, %p35
    %p37 = scmp.ne.s32.totalorder %s26, %s29
    %p38 = scmp.eq.s32.totalorder %s21, 1
    %p39 = por %p37, %p38
    %p40 = scmp.ne.s32.totalorder %s29, %s30
    %p41 = scmp.eq.s32.totalorder %s21, 0
    %p42 = por %p40, %p41
    %p43 = scmp.ne.s32.totalorder %s29, %s30
    %p44 = scmp.eq.s32.totalorder %s22, 1
    %p45 = por %p43, %p44
    %p47 = scmp.ne.s32.totalorder %s30, %s46
    %p48 = scmp.eq.s32.totalorder %s22, 0
    %p49 = por %p47, %p48
    %s50 = ssub.s32 %s16, %s23
    %p51 = scmp.eq.s32.totalorder %s50, 0
    %s53 = sadd.s32 %s52, 1
    %s54 = scalar_select %p51, %s52, %s53
    %p57 = pneg %p51
    %p58 = scmp.eq.s32.totalorder %s16, 1
    %p59 = por %p57, %p58
    %p60 = scmp.ne.s32.totalorder %s52, %s55
    %p61 = scmp.eq.s32.totalorder %s16, 0
    %p62 = por %p60, %p61
    %p63 = scmp.ne.s32.totalorder %s52, %s55
    %p64 = scmp.eq.s32.totalorder %s21, 1
    %p65 = por %p63, %p64
    %p66 = scmp.ne.s32.totalorder %s55, %s56
    %p67 = scmp.eq.s32.totalorder %s21, 0
    %p68 = por %p66, %p67
    %p69 = scmp.ne.s32.totalorder %s55, %s56
    %p70 = scmp.eq.s32.totalorder %s22, 1
    %p71 = por %p69, %p70
    %p73 = scmp.ne.s32.totalorder %s56, %s72
    %p74 = scmp.eq.s32.totalorder %s22, 0
    %p75 = por %p73, %p74
    %s77 = sadd.s32 %s76, 1
    %p80 = scmp.eq.s32.totalorder %s16, 1
    %p81 = scmp.ne.s32.totalorder %s76, %s78
    %p82 = scmp.eq.s32.totalorder %s16, 0
    %p83 = por %p81, %p82
    %p84 = scmp.ne.s32.totalorder %s76, %s78
    %p85 = scmp.eq.s32.totalorder %s21, 1
    %p86 = por %p84, %p85
    %p87 = scmp.ne.s32.totalorder %s78, %s79
    %p88 = scmp.eq.s32.totalorder %s21, 0
    %p89 = por %p87, %p88
    %p90 = scmp.ne.s32.totalorder %s78, %s79
    %p91 = scmp.eq.s32.totalorder %s22, 1
    %p92 = por %p90, %p91
    %p94 = scmp.ne.s32.totalorder %s79, %s93
    %p95 = scmp.eq.s32.totalorder %s22, 0
    %p96 = por %p94, %p95
    %s98 = sadd.s32 %s97, 1
    %p101 = scmp.eq.s32.totalorder %s16, 1
    %p102 = scmp.ne.s32.totalorder %s97, %s99
    %p103 = scmp.eq.s32.totalorder %s16, 0
    %p104 = por %p102, %p103
    %p105 = scmp.ne.s32.totalorder %s97, %s99
    %p106 = scmp.eq.s32.totalorder %s21, 1
    %p107 = por %p105, %p106
    %p108 = scmp.ne.s32.totalorder %s99, %s100
    %p109 = scmp.eq.s32.totalorder %s21, 0
    %p110 = por %p108, %p109
    %p111 = scmp.ne.s32.totalorder %s99, %s100
    %p112 = scmp.eq.s32.totalorder %s22, 1
    %p113 = por %p111, %p112
    %p115 = scmp.ne.s32.totalorder %s100, %s114
    %p116 = scmp.eq.s32.totalorder %s22, 0
    %p117 = por %p115, %p116
    %s119 = sadd.s32 %s118, 1
    %p122 = scmp.eq.s32.totalorder %s16, 1
    %p123 = scmp.ne.s32.totalorder %s118, %s120
    %p124 = scmp.eq.s32.totalorder %s16, 0
    %p125 = por %p123, %p124
    %p126 = scmp.ne.s32.totalorder %s118, %s120
    %p127 = scmp.eq.s32.totalorder %s21, 1
    %p128 = por %p126, %p127
    %p129 = scmp.ne.s32.totalorder %s120, %s121
    %p130 = scmp.eq.s32.totalorder %s21, 0
    %p131 = por %p129, %p130
    %p132 = scmp.ne.s32.totalorder %s120, %s121
    %p133 = scmp.eq.s32.totalorder %s22, 1
    %p134 = por %p132, %p133
    %p136 = scmp.ne.s32.totalorder %s121, %s135
    %p137 = scmp.eq.s32.totalorder %s22, 0
    %p138 = por %p136, %p137
    %s140 = sadd.s32 %s139, 1
    %p143 = scmp.eq.s32.totalorder %s16, 1
    %p144 = scmp.ne.s32.totalorder %s139, %s141
    %p145 = scmp.eq.s32.totalorder %s16, 0
    %p146 = por %p144, %p145
    %p147 = scmp.ne.s32.totalorder %s139, %s141
    %p148 = scmp.eq.s32.totalorder %s21, 1
    %p149 = por %p147, %p148
    %p150 = scmp.ne.s32.totalorder %s141, %s142
    %p151 = scmp.eq.s32.totalorder %s21, 0
    %p152 = por %p150, %p151
    %p153 = scmp.ne.s32.totalorder %s141, %s142
    %p154 = scmp.eq.s32.totalorder %s22, 1
    %p155 = por %p153, %p154
    %p157 = scmp.ne.s32.totalorder %s142, %s156
    %p158 = scmp.eq.s32.totalorder %s22, 0
    %p159 = por %p157, %p158
    %s161 = sadd.s32 %s160, 1
    %p164 = scmp.eq.s32.totalorder %s16, 1
    %p165 = scmp.ne.s32.totalorder %s160, %s162
    %p166 = scmp.eq.s32.totalorder %s16, 0
    %p167 = por %p165, %p166
    %p168 = scmp.ne.s32.totalorder %s160, %s162
    %p169 = scmp.eq.s32.totalorder %s21, 1
    %p170 = por %p168, %p169
    %p171 = scmp.ne.s32.totalorder %s162, %s163
    %p172 = scmp.eq.s32.totalorder %s21, 0
    %p173 = por %p171, %p172
    %p174 = scmp.ne.s32.totalorder %s162, %s163
    %p175 = scmp.eq.s32.totalorder %s22, 1
    %p176 = por %p174, %p175
    %p178 = scmp.ne.s32.totalorder %s163, %s177
    %p179 = scmp.eq.s32.totalorder %s22, 0
    %p180 = por %p178, %p179
    %s182 = sadd.s32 %s181, 1
    %p185 = scmp.eq.s32.totalorder %s16, 1
    %p186 = scmp.ne.s32.totalorder %s181, %s183
    %p187 = scmp.eq.s32.totalorder %s16, 0
    %p188 = por %p186, %p187
    %p189 = scmp.ne.s32.totalorder %s181, %s183
    %p190 = scmp.eq.s32.totalorder %s21, 1
    %p191 = por %p189, %p190
    %p192 = scmp.ne.s32.totalorder %s183, %s184
    %p193 = scmp.eq.s32.totalorder %s21, 0
    %p194 = por %p192, %p193
    %p195 = scmp.ne.s32.totalorder %s183, %s184
    %p196 = scmp.eq.s32.totalorder %s22, 1
    %p197 = por %p195, %p196
    %p199 = scmp.ne.s32.totalorder %s184, %s198
    %p200 = scmp.eq.s32.totalorder %s22, 0
    %p201 = por %p199, %p200
    %s203 = sadd.s32 %s202, 1
    %p206 = scmp.eq.s32.totalorder %s16, 1
    %p207 = scmp.ne.s32.totalorder %s202, %s204
    %p208 = scmp.eq.s32.totalorder %s16, 0
    %p209 = por %p207, %p208
    %p210 = scmp.ne.s32.totalorder %s202, %s204
    %p211 = scmp.eq.s32.totalorder %s21, 1
    %p212 = por %p210, %p211
    %p213 = scmp.ne.s32.totalorder %s204, %s205
    %p214 = scmp.eq.s32.totalorder %s21, 0
    %p215 = por %p213, %p214
    %p216 = scmp.ne.s32.totalorder %s204, %s205
    %p217 = scmp.eq.s32.totalorder %s22, 1
    %p218 = por %p216, %p217
    %p220 = scmp.ne.s32.totalorder %s205, %s219
    %p221 = scmp.eq.s32.totalorder %s22, 0
    %p222 = por %p220, %p221
    %s224 = sadd.s32 %s223, 1
    %p227 = scmp.eq.s32.totalorder %s16, 1
    %p228 = scmp.ne.s32.totalorder %s223, %s225
    %p229 = scmp.eq.s32.totalorder %s16, 0
    %p230 = por %p228, %p229
    %p231 = scmp.ne.s32.totalorder %s223, %s225
    %p232 = scmp.eq.s32.totalorder %s21, 1
    %p233 = por %p231, %p232
    %p234 = scmp.ne.s32.totalorder %s225, %s226
    %p235 = scmp.eq.s32.totalorder %s21, 0
    %p236 = por %p234, %p235
    %p237 = scmp.ne.s32.totalorder %s225, %s226
    %p238 = scmp.eq.s32.totalorder %s22, 1
    %p239 = por %p237, %p238
    %p241 = scmp.ne.s32.totalorder %s226, %s240
    %p242 = scmp.eq.s32.totalorder %s22, 0
    %p243 = por %p241, %p242
    %s244 = ssub.s32 %s16, %s23
    %p245 = scmp.eq.s32.totalorder %s244, 0
    %s247 = sadd.s32 %s246, 1
    %s248 = scalar_select %p245, %s246, %s247
    %p251 = pneg %p245
    %p252 = scmp.eq.s32.totalorder %s16, 1
    %p253 = por %p251, %p252
    %p254 = scmp.ne.s32.totalorder %s246, %s249
    %p255 = scmp.eq.s32.totalorder %s16, 0
    %p256 = por %p254, %p255
    %p257 = scmp.ne.s32.totalorder %s246, %s249
    %p258 = scmp.eq.s32.totalorder %s21, 1
    %p259 = por %p257, %p258
    %p260 = scmp.ne.s32.totalorder %s249, %s250
    %p261 = scmp.eq.s32.totalorder %s21, 0
    %p262 = por %p260, %p261
    %p263 = scmp.ne.s32.totalorder %s249, %s250
    %p264 = scmp.eq.s32.totalorder %s22, 1
    %p265 = por %p263, %p264
    %p267 = scmp.ne.s32.totalorder %s250, %s266
    %p268 = scmp.eq.s32.totalorder %s22, 0
    %p269 = por %p267, %p268
    %p270 = scmp.le.s32.totalorder 1, %s16
    %p271 = scmp.lt.s32.totalorder %s16, 3
    %p272 = pnand %p270, %p271
    %p273 = pneg %p272
    // Predicated region
    $region9: #{bottleneck_forward.1} parent=5 // pred_check
      _
    $region10: #{bottleneck_forward.1} parent=5 // pred_check_branch
      %275 = sbr.rel (%p272) target = $region12
    $region11: #{bottleneck_forward.1} parent=5 // pred_region
      %s276 = ssub.s32 %s16, 1
      // Predicated region
      $region13: #{bottleneck_forward.1} parent=11 // pred_check
        %p277 = pneg %p89
      $region14: #{bottleneck_forward.1} parent=11 // pred_check_branch
        %279 = sbr.rel (%p277) target = $region16
      $region15: #{bottleneck_forward.1} parent=11 // pred_region
        _
      $region16: #{bottleneck_forward.1} parent=11 // pred_fallthru
        _
      // Predicated region
      $region17: #{bottleneck_forward.1} parent=11 // pred_check
        %p280 = pneg %p110
      $region18: #{bottleneck_forward.1} parent=11 // pred_check_branch
        %282 = sbr.rel (%p280) target = $region20
      $region19: #{bottleneck_forward.1} parent=11 // pred_region
        _
      $region20: #{bottleneck_forward.1} parent=11 // pred_fallthru
        _
      // Predicated region
      $region21: #{bottleneck_forward.1} parent=11 // pred_check
        %p283 = pneg %p131
      $region22: #{bottleneck_forward.1} parent=11 // pred_check_branch
        %285 = sbr.rel (%p283) target = $region24
      $region23: #{bottleneck_forward.1} parent=11 // pred_region
        _
      $region24: #{bottleneck_forward.1} parent=11 // pred_fallthru
        _
      // Predicated region
      $region25: #{bottleneck_forward.1} parent=11 // pred_check
        %p286 = pneg %p152
      $region26: #{bottleneck_forward.1} parent=11 // pred_check_branch
        %288 = sbr.rel (%p286) target = $region28
      $region27: #{bottleneck_forward.1} parent=11 // pred_region
        _
      $region28: #{bottleneck_forward.1} parent=11 // pred_fallthru
        _
      // Predicated region
      $region29: #{bottleneck_forward.1} parent=11 // pred_check
        %p289 = pneg %p173
      $region30: #{bottleneck_forward.1} parent=11 // pred_check_branch
        %291 = sbr.rel (%p289) target = $region32
      $region31: #{bottleneck_forward.1} parent=11 // pred_region
        _
      $region32: #{bottleneck_forward.1} parent=11 // pred_fallthru
        _
      // Predicated region
      $region33: #{bottleneck_forward.1} parent=11 // pred_check
        %p292 = pneg %p194
      $region34: #{bottleneck_forward.1} parent=11 // pred_check_branch
        %294 = sbr.rel (%p292) target = $region36
      $region35: #{bottleneck_forward.1} parent=11 // pred_region
        _
      $region36: #{bottleneck_forward.1} parent=11 // pred_fallthru
        _
      // Predicated region
      $region37: #{bottleneck_forward.1} parent=11 // pred_check
        %p295 = pneg %p215
      $region38: #{bottleneck_forward.1} parent=11 // pred_check_branch
        %297 = sbr.rel (%p295) target = $region40
      $region39: #{bottleneck_forward.1} parent=11 // pred_region
        _
      $region40: #{bottleneck_forward.1} parent=11 // pred_fallthru
        _
      // Predicated region
      $region41: #{bottleneck_forward.1} parent=11 // pred_check
        %p298 = pneg %p236
      $region42: #{bottleneck_forward.1} parent=11 // pred_check_branch
        %300 = sbr.rel (%p298) target = $region44
      $region43: #{bottleneck_forward.1} parent=11 // pred_region
        _
      $region44: #{bottleneck_forward.1} parent=11 // pred_fallthru
        _
    $region12: #{bottleneck_forward.1} parent=5 // pred_fallthru
      _
    %p301 = scmp.lt.s32.totalorder %s16, 2
    // Predicated region
    $region45: #{bottleneck_forward.1} parent=5 // pred_check
      %p302 = pneg %p301
    $region46: #{bottleneck_forward.1} parent=5 // pred_check_branch
      %304 = sbr.rel (%p302) target = $region48
    $region47: #{bottleneck_forward.1} parent=5 // pred_region
      // Predicated region
      $region49: #{bottleneck_forward.1} parent=47 // pred_check
        %p305 = pneg %p36
      $region50: #{bottleneck_forward.1} parent=47 // pred_check_branch
        %307 = sbr.rel (%p305) target = $region52
      $region51: #{bottleneck_forward.1} parent=47 // pred_region
        %p308 = scmp.lt.s32.totalorder %s16, 1
        %s309 = scalar_select %p308, %s16, 1
        %s310 = smul.addr %s309, 9
        %s311 = smul.addr %s310, 8
        %s312 = scalar_lea.vmem %s0, %s311
      $region52: #{bottleneck_forward.1} parent=47 // pred_fallthru
        _
      // Predicated region
      $region53: #{bottleneck_forward.1} parent=47 // pred_check
        %p313 = pneg %p62
      $region54: #{bottleneck_forward.1} parent=47 // pred_check_branch
        %315 = sbr.rel (%p313) target = $region56
      $region55: #{bottleneck_forward.1} parent=47 // pred_region
        %p316 = scmp.lt.s32.totalorder %s16, 1
        %s317 = scalar_select %p316, %s16, 1
        %s318 = smul.addr %s317, 4
        %s319 = smul.addr %s318, 8
        %s320 = scalar_lea.vmem %s1, %s319
      $region56: #{bottleneck_forward.1} parent=47 // pred_fallthru
        _
    $region48: #{bottleneck_forward.1} parent=5 // pred_fallthru
      _
    %p321 = scmp.le.s32.totalorder 1, %s16
    %p322 = scmp.lt.s32.totalorder %s16, 3
    %p323 = pnand %p321, %p322
    %p324 = pneg %p323
    // Predicated region
    $region57: #{bottleneck_forward.1} parent=5 // pred_check
      _
    $region58: #{bottleneck_forward.1} parent=5 // pred_check_branch
      %326 = sbr.rel (%p323) target = $region60
    $region59: #{bottleneck_forward.1} parent=5 // pred_region
      %s327 = ssub.s32 %s16, 1
      %p328 = scmp.lt.s32.totalorder %s21, 1
      %s329 = scalar_select %p328, %s21, 1
      %s330 = smul.addr %s329, 9
      %s331 = smul.addr %s330, 8
      %s332 = scalar_lea.vmem %s0, %s331
      %p333 = pneg %p42
      %p334 = pneg %p39
      %p335 = scmp.lt.s32.totalorder %s21, 1
      %s336 = scalar_select %p335, %s21, 1
      %s337 = smul.addr %s336, 4
      %s338 = smul.addr %s337, 8
      %s339 = scalar_lea.vmem %s1, %s338
      %p340 = pneg %p68
      %p341 = pneg %p65
      %p342 = pneg %p89
      %p343 = pneg %p86
      %p344 = pneg %p110
      %p345 = pneg %p107
      %p346 = pneg %p131
      %p347 = pneg %p128
      %p348 = pneg %p152
      %p349 = pneg %p149
      %p350 = pneg %p173
      %p351 = pneg %p170
      %p352 = pneg %p194
      %p353 = pneg %p191
      %p354 = pneg %p215
      %p355 = pneg %p212
      %p356 = pneg %p236
      %p357 = pneg %p233
      %p358 = pneg %p262
      %p359 = pneg %p259
      %p360 = scmp.lt.s32.totalorder %s21, 1
      %s361 = scalar_select %p360, %s21, 1
      %s362 = smul.addr %s361, 4
      %s363 = smul.addr %s362, 8
      %s364 = scalar_lea.vmem %s10, %s363
      %p365 = scmp.lt.s32.totalorder %s21, 1
      %s366 = scalar_select %p365, %s21, 1
      %s367 = smul.addr %s366, 9
      %s368 = smul.addr %s367, 8
      %s369 = scalar_lea.vmem %s0, %s368
      %p370 = scmp.lt.s32.totalorder %s21, 1
      %s371 = scalar_select %p370, %s21, 1
      %s372 = smul.addr %s371, 4
      %s373 = smul.addr %s372, 8
      %s374 = scalar_lea.vmem %s1, %s373
      %p375 = scmp.lt.s32.totalorder %s21, 1
      %s376 = scalar_select %p375, %s21, 1
      %s377 = smul.addr %s376, 4
      %s378 = smul.addr %s377, 8
      %s379 = scalar_lea.vmem %s10, %s378
      %v380 = vld [vmem:[%s369] sm:$0xff]
      %v381 = vld [vmem:[%s369 + $0x8] sm:$0xff]
      %v382 = vld [vmem:[%s369 + $0x10] sm:$0xff]
      %v383 = vld [vmem:[%s369 + $0x18] sm:$0xff]
      %v384 = vld [vmem:[%s369 + $0x20] sm:$0xff]
      %v385 = vld [vmem:[%s369 + $0x28] sm:$0xff]
      %v386 = vld [vmem:[%s369 + $0x30] sm:$0x3]
      %v387 = vld [vmem:[%s369 + $0x38] sm:$0x3]
      %v388 = vld [vmem:[%s369 + $0x40] sm:$0x3]
      %v389 = vld [vmem:[%s2] sm:$0x7]
      %v391 = vlaneseq
      %v392 = vshrl.u32 %v391, 7
      %v393 = vsub.s32 0, %v392
      %v394 = vrot.slane %v389, %v393
      %v395 = vlaneseq
      %v396 = vshrl.u32 %v395, 7
      %v397 = vsub.s32 1, %v396
      %v398 = vrot.slane %v389, %v397
      %v399 = vlaneseq
      %v400 = vshrl.u32 %v399, 7
      %v401 = vsub.s32 2, %v400
      %v402 = vrot.slane %v389, %v401
      %v406 = vmul.f32 %v380, %v394
      %v407 = vmul.f32 %v381, %v398
      %v408 = vmul.f32 %v382, %v402
      %v409 = vmul.f32 %v383, %v394
      %v410 = vmul.f32 %v384, %v398
      %v411 = vmul.f32 %v385, %v402
      %v412 = vmul.f32 %v386, %v394
      %v413 = vmul.f32 %v387, %v398
      %v414 = vmul.f32 %v388, %v402
      %v415 = vld [vmem:[%s3] sm:$0x7]
      %v417 = vlaneseq
      %v418 = vshrl.u32 %v417, 7
      %v419 = vsub.s32 0, %v418
      %v420 = vrot.slane %v415, %v419
      %v421 = vlaneseq
      %v422 = vshrl.u32 %v421, 7
      %v423 = vsub.s32 1, %v422
      %v424 = vrot.slane %v415, %v423
      %v425 = vlaneseq
      %v426 = vshrl.u32 %v425, 7
      %v427 = vsub.s32 2, %v426
      %v428 = vrot.slane %v415, %v427
      %v432 = vadd.f32 %v406, %v420
      %v433 = vadd.f32 %v407, %v424
      %v434 = vadd.f32 %v408, %v428
      %v435 = vadd.f32 %v409, %v420
      %v436 = vadd.f32 %v410, %v424
      %v437 = vadd.f32 %v411, %v428
      %v438 = vadd.f32 %v412, %v420
      %v439 = vadd.f32 %v413, %v424
      %v440 = vadd.f32 %v414, %v428
      %vm441 = vcmp.gt.f32.partialorder %v432, 0.0
      %vm442 = vcmp.gt.f32.partialorder %v433, 0.0
      %vm443 = vcmp.gt.f32.partialorder %v434, 0.0
      %vm444 = vcmp.gt.f32.partialorder %v435, 0.0
      %vm445 = vcmp.gt.f32.partialorder %v436, 0.0
      %vm446 = vcmp.gt.f32.partialorder %v437, 0.0
      %vm447 = vcmp.gt.f32.partialorder %v438, 0.0
      %vm448 = vcmp.gt.f32.partialorder %v439, 0.0
      %vm449 = vcmp.gt.f32.partialorder %v440, 0.0
      %v450 = vmul.f32 %v432, 0.1
      %v451 = vmul.f32 %v433, 0.1
      %v452 = vmul.f32 %v434, 0.1
      %v453 = vmul.f32 %v435, 0.1
      %v454 = vmul.f32 %v436, 0.1
      %v455 = vmul.f32 %v437, 0.1
      %v456 = vmul.f32 %v438, 0.1
      %v457 = vmul.f32 %v439, 0.1
      %v458 = vmul.f32 %v440, 0.1
      %v459 = vsel %vm441, %v432, %v450
      %v460 = vsel %vm442, %v433, %v451
      %v461 = vsel %vm443, %v434, %v452
      %v462 = vsel %vm444, %v435, %v453
      %v463 = vsel %vm445, %v436, %v454
      %v464 = vsel %vm446, %v437, %v455
      %v465 = vsel %vm447, %v438, %v456
      %v466 = vsel %vm448, %v439, %v457
      %v467 = vsel %vm449, %v440, %v458
      %v468 = vld [vmem:[%s4] sm:$0xff]
      %v469 = vld [vmem:[%s4 + $0x8] sm:$0xff]
      %v470 = vld [vmem:[%s4 + $0x10] sm:$0xff]
      %v471 = vld [vmem:[%s4 + $0x18] sm:$0xff]
      %v472 = vld [vmem:[%s4 + $0x20] sm:$0xff]
      %v473 = vld [vmem:[%s4 + $0x28] sm:$0xff]
      %v474 = vld [vmem:[%s4 + $0x30] sm:$0xff]
      %v475 = vld [vmem:[%s4 + $0x38] sm:$0xff]
      %v476 = vld [vmem:[%s4 + $0x40] sm:$0xff]
      %v477 = vld [vmem:[%s4 + $0x48] sm:$0xff]
      %v478 = vld [vmem:[%s4 + $0x50] sm:$0xff]
      %v479 = vld [vmem:[%s4 + $0x58] sm:$0xff]
      %v480 = vld [vmem:[%s4 + $0x60] sm:$0xff]
      %v481 = vld [vmem:[%s4 + $0x68] sm:$0xff]
      %v482 = vld [vmem:[%s4 + $0x70] sm:$0xff]
      %v483 = vld [vmem:[%s4 + $0x78] sm:$0xff]
      %v484 = vld [vmem:[%s4 + $0x80] sm:$0xff]
      %v485 = vld [vmem:[%s4 + $0x88] sm:$0xff]
      %v486 = vld [vmem:[%s4 + $0x90] sm:$0xff]
      %v487 = vld [vmem:[%s4 + $0x98] sm:$0xff]
      %v488 = vld [vmem:[%s4 + $0xa0] sm:$0xff]
      %v489 = vld [vmem:[%s4 + $0xa8] sm:$0xff]
      %v490 = vld [vmem:[%s4 + $0xb0] sm:$0xff]
      %v491 = vld [vmem:[%s4 + $0xb8] sm:$0xff]
      %v492 = vld [vmem:[%s4 + $0xc0] sm:$0xff]
      %v493 = vld [vmem:[%s4 + $0xc8] sm:$0xff]
      %v494 = vld [vmem:[%s4 + $0xd0] sm:$0xff]
      %v495 = vld [vmem:[%s4 + $0xd8] sm:$0xff]
      %v496 = vld [vmem:[%s4 + $0xe0] sm:$0xff]
      %v497 = vld [vmem:[%s4 + $0xe8] sm:$0xff]
      %v498 = vld [vmem:[%s4 + $0xf0] sm:$0xff]
      %v499 = vld [vmem:[%s4 + $0xf8] sm:$0xff]
      %v500 = vld [vmem:[%s4 + $0x100] sm:$0xff]
      %v501 = vld [vmem:[%s4 + $0x108] sm:$0xff]
      %v502 = vld [vmem:[%s4 + $0x110] sm:$0xff]
      %v503 = vld [vmem:[%s4 + $0x118] sm:$0xff]
      %v504 = vld [vmem:[%s5] sm:$0x1]
      %v506 = vlaneseq
      %v507 = vshrl.u32 %v506, 7
      %v508 = vsub.s32 0, %v507
      %v509 = vrot.slane %v504, %v508
      %vm511 = vcmask 261120
      %v513 = vsel %vm511, %v461, 0
      %v516 = vsel %vm511, %v464, 0
      %v519 = vsel %vm511, %v467, 0
      %521 = vmatprep.subr.mxu0 0.0
      %522 = vmatpush1.msra.mxu0 %v468
      %523 = vmatprep.subr.mxu0 0.0
      %524 = vmatpush1.msra.mxu0 %v469
      %525 = vmatprep.subr.mxu0 0.0
      %526 = vmatpush1.msra.mxu0 %v470
      %527 = vmatprep.subr.mxu0 0.0
      %528 = vmatpush1.msra.mxu0 %v471
      %529 = vmatprep.subr.mxu0 0.0
      %530 = vmatpush1.msra.mxu0 %v472
      %531 = vmatprep.subr.mxu0 0.0
      %532 = vmatpush1.msra.mxu0 %v473
      %533 = vmatprep.subr.mxu0 0.0
      %534 = vmatpush1.msra.mxu0 %v474
      %535 = vmatprep.subr.mxu0 0.0
      %536 = vmatpush1.msra.mxu0 %v475
      %537 = vmatprep.subr.mxu0 0.0
      %538 = vmatpush1.msra.mxu0 %v476
      %539 = vmatprep.subr.mxu0 0.0
      %540 = vmatpush1.msra.mxu0 %v477
      %541 = vmatprep.subr.mxu0 0.0
      %542 = vmatpush1.msra.mxu0 %v478
      %543 = vmatprep.subr.mxu0 0.0
      %544 = vmatpush1.msra.mxu0 %v479
      %545 = vmatprep.subr.mxu0 0.0
      %546 = vmatpush1.msra.mxu0 %v480
      %547 = vmatprep.subr.mxu0 0.0
      %548 = vmatpush1.msra.mxu0 %v481
      %549 = vmatprep.subr.mxu0 0.0
      %550 = vmatpush1.msra.mxu0 %v482
      %551 = vmatprep.subr.mxu0 0.0
      %552 = vmatpush1.msra.mxu0 %v483
      %553 = vmatprep.subr.mxu0 0.0
      %554 = vmatpush1.msra.mxu0 %v484
      %555 = vmatprep.subr.mxu0 0.0
      %556 = vmatpush1.msra.mxu0 %v485
      %557 = vmatprep.subr.mxu0 0.0
      %558 = vmatpush1.msra.mxu0 %v486
      %559 = vmatprep.subr.mxu0 0.0
      %560 = vmatpush1.msra.mxu0 %v487
      %561 = vmatprep.subr.mxu0 0.0
      %562 = vmatpush1.msra.mxu0 %v488
      %563 = vmatprep.subr.mxu0 0.0
      %564 = vmatpush1.msra.mxu0 %v489
      %565 = vmatprep.subr.mxu0 0.0
      %566 = vmatpush1.msra.mxu0 %v490
      %567 = vmatprep.subr.mxu0 0.0
      %568 = vmatpush1.msra.mxu0 %v491
      %569 = vmatprep.subr.mxu0 0.0
      %570 = vmatpush1.msra.mxu0 %v492
      %571 = vmatprep.subr.mxu0 0.0
      %572 = vmatpush1.msra.mxu0 %v493
      %573 = vmatprep.subr.mxu0 0.0
      %574 = vmatpush1.msra.mxu0 %v494
      %575 = vmatprep.subr.mxu0 0.0
      %576 = vmatpush1.msra.mxu0 %v495
      %577 = vmatprep.subr.mxu0 0.0
      %578 = vmatpush1.msra.mxu0 %v496
      %579 = vmatprep.subr.mxu0 0.0
      %580 = vmatpush1.msra.mxu0 %v497
      %581 = vmatprep.subr.mxu0 0.0
      %582 = vmatpush1.msra.mxu0 %v498
      %583 = vmatprep.subr.mxu0 0.0
      %584 = vmatpush1.msra.mxu0 %v499
      %585 = vmatprep.mubr.f32.mxu0 %v460
      %586 = vmatmul.mubr.f32.gmra.mrb[0].mxu0 %v459
      %v587 = vpop.f32.mrb[0].mxu0
      %v588 = vadd.f32 %v509, %v587
      %v589 = vpop.f32.mrb[0].mxu0
      %590 = vmatprep.mubr.f32.mxu0 %v463
      %591 = vmatmul.mubr.f32.gmra.mrb[0].mxu0 %v462
      %v592 = vpop.f32.mrb[0].mxu0
      %v593 = vadd.f32 %v509, %v592
      %v594 = vpop.f32.mrb[0].mxu0
      %595 = vmatprep.mubr.f32.mxu0 %v466
      %596 = vmatmul.mubr.f32.gmra.mrb[0].mxu0 %v465
      %v597 = vpop.f32.mrb[0].mxu0
      %v598 = vadd.f32 %v509, %v597
      %v599 = vpop.f32.mrb[0].mxu0
      %600 = vdwg.mxu0
      %601 = vmatprep.subr.mxu0 0.0
      %602 = vmatpush1.msra.mxu0 %v500
      %603 = vmatprep.subr.mxu0 0.0
      %604 = vmatpush1.msra.mxu0 %v501
      %605 = vmatprep.subr.mxu0 0.0
      %606 = vmatpush1.msra.mxu0 %v502
      %607 = vmatprep.subr.mxu0 0.0
      %608 = vmatpush1.msra.mxu0 %v503
      %609 = vmatprep.subr.mxu0 0.0
      %610 = vmatpush1.msra.mxu0 0.0
      %611 = vmatprep.subr.mxu0 0.0
      %612 = vmatpush1.msra.mxu0 0.0
      %613 = vmatprep.subr.mxu0 0.0
      %614 = vmatpush1.msra.mxu0 0.0
      %615 = vmatprep.subr.mxu0 0.0
      %616 = vmatpush1.msra.mxu0 0.0
      %617 = vmatprep.subr.mxu0 0.0
      %618 = vmatpush1.msra.mxu0 0.0
      %619 = vmatprep.subr.mxu0 0.0
      %620 = vmatpush1.msra.mxu0 0.0
      %621 = vmatprep.subr.mxu0 0.0
      %622 = vmatpush1.msra.mxu0 0.0
      %623 = vmatprep.subr.mxu0 0.0
      %624 = vmatpush1.msra.mxu0 0.0
      %625 = vmatprep.subr.mxu0 0.0
      %626 = vmatpush1.msra.mxu0 0.0
      %627 = vmatprep.subr.mxu0 0.0
      %628 = vmatpush1.msra.mxu0 0.0
      %629 = vmatprep.subr.mxu0 0.0
      %630 = vmatpush1.msra.mxu0 0.0
      %631 = vmatprep.subr.mxu0 0.0
      %632 = vmatpush1.msra.mxu0 0.0
      %633 = vmatprep.subr.mxu0 0.0
      %634 = vmatpush1.msra.mxu0 0.0
      %635 = vmatprep.subr.mxu0 0.0
      %636 = vmatpush1.msra.mxu0 0.0
      %637 = vmatprep.subr.mxu0 0.0
      %638 = vmatpush1.msra.mxu0 0.0
      %639 = vmatprep.subr.mxu0 0.0
      %640 = vmatpush1.msra.mxu0 0.0
      %641 = vmatprep.subr.mxu0 0.0
      %642 = vmatpush1.msra.mxu0 0.0
      %643 = vmatprep.subr.mxu0 0.0
      %644 = vmatpush1.msra.mxu0 0.0
      %645 = vmatprep.subr.mxu0 0.0
      %646 = vmatpush1.msra.mxu0 0.0
      %647 = vmatprep.subr.mxu0 0.0
      %648 = vmatpush1.msra.mxu0 0.0
      %649 = vmatprep.subr.mxu0 0.0
      %650 = vmatpush1.msra.mxu0 0.0
      %651 = vmatprep.subr.mxu0 0.0
      %652 = vmatpush1.msra.mxu0 0.0
      %653 = vmatprep.subr.mxu0 0.0
      %654 = vmatpush1.msra.mxu0 0.0
      %655 = vmatprep.subr.mxu0 0.0
      %656 = vmatpush1.msra.mxu0 0.0
      %657 = vmatprep.subr.mxu0 0.0
      %658 = vmatpush1.msra.mxu0 0.0
      %659 = vmatprep.subr.mxu0 0.0
      %660 = vmatpush1.msra.mxu0 0.0
      %661 = vmatprep.subr.mxu0 0.0
      %662 = vmatpush1.msra.mxu0 0.0
      %663 = vmatprep.subr.mxu0 0.0
      %664 = vmatpush1.msra.mxu0 0.0
      %665 = vmatprep.mubr.f32.mxu0 0.0
      %666 = vmatmul.mubr.f32.gmra.mrb[0].mxu0 %v513
      %v667 = vpop.f32.mrb[0].mxu0
      %v668 = vadd.f32 %v588, %v667
      %v669 = vpop.f32.mrb[0].mxu0
      %670 = vmatprep.mubr.f32.mxu0 0.0
      %671 = vmatmul.mubr.f32.gmra.mrb[0].mxu0 %v516
      %v672 = vpop.f32.mrb[0].mxu0
      %v673 = vadd.f32 %v593, %v672
      %v674 = vpop.f32.mrb[0].mxu0
      %675 = vmatprep.mubr.f32.mxu0 0.0
      %676 = vmatmul.mubr.f32.gmra.mrb[0].mxu0 %v519
      %v677 = vpop.f32.mrb[0].mxu0
      %v678 = vadd.f32 %v598, %v677
      %v679 = vpop.f32.mrb[0].mxu0
      %680 = vdwg.mxu0
      %vm681 = vcmp.gt.f32.partialorder %v668, 0.0
      %vm682 = vcmp.gt.f32.partialorder %v673, 0.0
      %vm683 = vcmp.gt.f32.partialorder %v678, 0.0
      %v684 = vmul.f32 %v668, 0.1
      %v685 = vmul.f32 %v673, 0.1
      %v686 = vmul.f32 %v678, 0.1
      %v687 = vsel %vm681, %v668, %v684
      %v688 = vsel %vm682, %v673, %v685
      %v689 = vsel %vm683, %v678, %v686
      %vm690 = vcmask 588800
      %691 = vst.msk [vmem:[#allocation2] sm:$0xff] %vm690, %v687
      %692 = vst.msk [vmem:[#allocation2 + $0x8] sm:$0xff] %vm690, %v688
      %vm693 = vcmask 582656
      %694 = vst.msk [vmem:[#allocation2 + $0x10] sm:$0x3] %vm693, %v689
      %v695 = vld [vmem:[#allocation2] sm:$0xff]
      %v696 = vld [vmem:[#allocation2 + $0x8] sm:$0xff]
      %v697 = vld [vmem:[%s6] sm:$0xff]
      %v698 = vld [vmem:[%s6 + $0x8] sm:$0xff]
      %v699 = vld [vmem:[%s6 + $0x10] sm:$0xff]
      %v700 = vld [vmem:[%s6 + $0x18] sm:$0xff]
      %v701 = vld [vmem:[%s6 + $0x20] sm:$0xff]
      %v702 = vld [vmem:[%s6 + $0x28] sm:$0xff]
      %v703 = vld [vmem:[%s6 + $0x30] sm:$0xff]
      %v704 = vld [vmem:[%s6 + $0x38] sm:$0xff]
      %v705 = vld [vmem:[%s6 + $0x40] sm:$0xff]
      %v706 = vld [vmem:[%s7] sm:$0x1]
      %v708 = vlaneseq
      %v709 = vshrl.u32 %v708, 7
      %v710 = vsub.s32 0, %v709
      %v711 = vrot.slane %v706, %v710
      %v714 = vsel %vm690, %v695, 0
      %v717 = vsel %vm690, %v696, 0
      %719 = vmatprep.subr.mxu0 0.0
      %720 = vmatpush1.msra.mxu0 %v697
      %721 = vmatprep.subr.mxu0 0.0
      %722 = vmatpush1.msra.mxu0 %v698
      %723 = vmatprep.subr.mxu0 0.0
      %724 = vmatpush1.msra.mxu0 %v699
      %725 = vmatprep.subr.mxu0 0.0
      %726 = vmatpush1.msra.mxu0 %v700
      %727 = vmatprep.subr.mxu0 0.0
      %728 = vmatpush1.msra.mxu0 %v701
      %729 = vmatprep.subr.mxu0 0.0
      %730 = vmatpush1.msra.mxu0 %v702
      %731 = vmatprep.subr.mxu0 0.0
      %732 = vmatpush1.msra.mxu0 %v703
      %733 = vmatprep.subr.mxu0 0.0
      %734 = vmatpush1.msra.mxu0 %v704
      %735 = vmatprep.subr.mxu0 0.0
      %736 = vmatpush1.msra.mxu0 %v705
      %737 = vmatprep.subr.mxu0 0.0
      %738 = vmatpush1.msra.mxu0 0.0
      %739 = vmatprep.subr.mxu0 0.0
      %740 = vmatpush1.msra.mxu0 0.0
      %741 = vmatprep.subr.mxu0 0.0
      %742 = vmatpush1.msra.mxu0 0.0
      %743 = vmatprep.subr.mxu0 0.0
      %744 = vmatpush1.msra.mxu0 0.0
      %745 = vmatprep.subr.mxu0 0.0
      %746 = vmatpush1.msra.mxu0 0.0
      %747 = vmatprep.subr.mxu0 0.0
      %748 = vmatpush1.msra.mxu0 0.0
      %749 = vmatprep.subr.mxu0 0.0
      %750 = vmatpush1.msra.mxu0 0.0
      %751 = vmatprep.subr.mxu0 0.0
      %752 = vmatpush1.msra.mxu0 0.0
      %753 = vmatprep.subr.mxu0 0.0
      %754 = vmatpush1.msra.mxu0 0.0
      %755 = vmatprep.subr.mxu0 0.0
      %756 = vmatpush1.msra.mxu0 0.0
      %757 = vmatprep.subr.mxu0 0.0
      %758 = vmatpush1.msra.mxu0 0.0
      %759 = vmatprep.subr.mxu0 0.0
      %760 = vmatpush1.msra.mxu0 0.0
      %761 = vmatprep.subr.mxu0 0.0
      %762 = vmatpush1.msra.mxu0 0.0
      %763 = vmatprep.subr.mxu0 0.0
      %764 = vmatpush1.msra.mxu0 0.0
      %765 = vmatprep.subr.mxu0 0.0
      %766 = vmatpush1.msra.mxu0 0.0
      %767 = vmatprep.subr.mxu0 0.0
      %768 = vmatpush1.msra.mxu0 0.0
      %769 = vmatprep.subr.mxu0 0.0
      %770 = vmatpush1.msra.mxu0 0.0
      %771 = vmatprep.subr.mxu0 0.0
      %772 = vmatpush1.msra.mxu0 0.0
      %773 = vmatprep.subr.mxu0 0.0
      %774 = vmatpush1.msra.mxu0 0.0
      %775 = vmatprep.subr.mxu0 0.0
      %776 = vmatpush1.msra.mxu0 0.0
      %777 = vmatprep.subr.mxu0 0.0
      %778 = vmatpush1.msra.mxu0 0.0
      %779 = vmatprep.subr.mxu0 0.0
      %780 = vmatpush1.msra.mxu0 0.0
      %781 = vmatprep.subr.mxu0 0.0
      %782 = vmatpush1.msra.mxu0 0.0
      %783 = vmatprep.mubr.f32.mxu0 0.0
      %784 = vmatmul.mubr.f32.gmra.mrb[0].mxu0 %v714
      %v785 = vpop.f32.mrb[0].mxu0
      %v786 = vadd.f32 %v711, %v785
      %v787 = vpop.f32.mrb[0].mxu0
      %788 = vmatprep.mubr.f32.mxu0 0.0
      %789 = vmatmul.mubr.f32.gmra.mrb[0].mxu0 %v717
      %v790 = vpop.f32.mrb[0].mxu0
      %v791 = vadd.f32 %v711, %v790
      %v792 = vpop.f32.mrb[0].mxu0
      %793 = vdwg.mxu0
      %v794 = vld [vmem:[#allocation2 + $0x1] sm:$0xff]
      %v795 = vld [vmem:[#allocation2 + $0x9] sm:$0xff]
      %s796 = scalar_lea.vmem %s6, 72
      %v797 = vld [vmem:[%s796] sm:$0xff]
      %v798 = vld [vmem:[%s796 + $0x8] sm:$0xff]
      %v799 = vld [vmem:[%s796 + $0x10] sm:$0xff]
      %v800 = vld [vmem:[%s796 + $0x18] sm:$0xff]
      %v801 = vld [vmem:[%s796 + $0x20] sm:$0xff]
      %v802 = vld [vmem:[%s796 + $0x28] sm:$0xff]
      %v803 = vld [vmem:[%s796 + $0x30] sm:$0xff]
      %v804 = vld [vmem:[%s796 + $0x38] sm:$0xff]
      %v805 = vld [vmem:[%s796 + $0x40] sm:$0xff]
      %v807 = vsel %vm690, %v794, 0
      %v810 = vsel %vm690, %v795, 0
      %812 = vmatprep.subr.mxu0 0.0
      %813 = vmatpush1.msra.mxu0 %v797
      %814 = vmatprep.subr.mxu0 0.0
      %815 = vmatpush1.msra.mxu0 %v798
      %816 = vmatprep.subr.mxu0 0.0
      %817 = vmatpush1.msra.mxu0 %v799
      %818 = vmatprep.subr.mxu0 0.0
      %819 = vmatpush1.msra.mxu0 %v800
      %820 = vmatprep.subr.mxu0 0.0
      %821 = vmatpush1.msra.mxu0 %v801
      %822 = vmatprep.subr.mxu0 0.0
      %823 = vmatpush1.msra.mxu0 %v802
      %824 = vmatprep.subr.mxu0 0.0
      %825 = vmatpush1.msra.mxu0 %v803
      %826 = vmatprep.subr.mxu0 0.0
      %827 = vmatpush1.msra.mxu0 %v804
      %828 = vmatprep.subr.mxu0 0.0
      %829 = vmatpush1.msra.mxu0 %v805
      %830 = vmatprep.subr.mxu0 0.0
      %831 = vmatpush1.msra.mxu0 0.0
      %832 = vmatprep.subr.mxu0 0.0
      %833 = vmatpush1.msra.mxu0 0.0
      %834 = vmatprep.subr.mxu0 0.0
      %835 = vmatpush1.msra.mxu0 0.0
      %836 = vmatprep.subr.mxu0 0.0
      %837 = vmatpush1.msra.mxu0 0.0
      %838 = vmatprep.subr.mxu0 0.0
      %839 = vmatpush1.msra.mxu0 0.0
      %840 = vmatprep.subr.mxu0 0.0
      %841 = vmatpush1.msra.mxu0 0.0
      %842 = vmatprep.subr.mxu0 0.0
      %843 = vmatpush1.msra.mxu0 0.0
      %844 = vmatprep.subr.mxu0 0.0
      %845 = vmatpush1.msra.mxu0 0.0
      %846 = vmatprep.subr.mxu0 0.0
      %847 = vmatpush1.msra.mxu0 0.0
      %848 = vmatprep.subr.mxu0 0.0
      %849 = vmatpush1.msra.mxu0 0.0
      %850 = vmatprep.subr.mxu0 0.0
      %851 = vmatpush1.msra.mxu0 0.0
      %852 = vmatprep.subr.mxu0 0.0
      %853 = vmatpush1.msra.mxu0 0.0
      %854 = vmatprep.subr.mxu0 0.0
      %855 = vmatpush1.msra.mxu0 0.0
      %856 = vmatprep.subr.mxu0 0.0
      %857 = vmatpush1.msra.mxu0 0.0
      %858 = vmatprep.subr.mxu0 0.0
      %859 = vmatpush1.msra.mxu0 0.0
      %860 = vmatprep.subr.mxu0 0.0
      %861 = vmatpush1.msra.mxu0 0.0
      %862 = vmatprep.subr.mxu0 0.0
      %863 = vmatpush1.msra.mxu0 0.0
      %864 = vmatprep.subr.mxu0 0.0
      %865 = vmatpush1.msra.mxu0 0.0
      %866 = vmatprep.subr.mxu0 0.0
      %867 = vmatpush1.msra.mxu0 0.0
      %868 = vmatprep.subr.mxu0 0.0
      %869 = vmatpush1.msra.mxu0 0.0
      %870 = vmatprep.subr.mxu0 0.0
      %871 = vmatpush1.msra.mxu0 0.0
      %872 = vmatprep.subr.mxu0 0.0
      %873 = vmatpush1.msra.mxu0 0.0
      %874 = vmatprep.subr.mxu0 0.0
      %875 = vmatpush1.msra.mxu0 0.0
      %876 = vmatprep.mubr.f32.mxu0 0.0
      %877 = vmatmul.mubr.f32.gmra.mrb[0].mxu0 %v807
      %v878 = vpop.f32.mrb[0].mxu0
      %v879 = vadd.f32 0.0, %v878
      %v880 = vpop.f32.mrb[0].mxu0
      %881 = vmatprep.mubr.f32.mxu0 0.0
      %882 = vmatmul.mubr.f32.gmra.mrb[0].mxu0 %v810
      %v883 = vpop.f32.mrb[0].mxu0
      %v884 = vadd.f32 0.0, %v883
      %v885 = vpop.f32.mrb[0].mxu0
      %886 = vdwg.mxu0
      %v887 = vadd.f32 %v786, %v879
      %v888 = vadd.f32 %v791, %v884
      %v889 = vld [vmem:[#allocation2 + $0x2] sm:$0xff]
      %v890 = vld [vmem:[#allocation2 + $0xa] sm:$0xff]
      %s891 = scalar_lea.vmem %s6, 144
      %v892 = vld [vmem:[%s891] sm:$0xff]
      %v893 = vld [vmem:[%s891 + $0x8] sm:$0xff]
      %v894 = vld [vmem:[%s891 + $0x10] sm:$0xff]
      %v895 = vld [vmem:[%s891 + $0x18] sm:$0xff]
      %v896 = vld [vmem:[%s891 + $0x20] sm:$0xff]
      %v897 = vld [vmem:[%s891 + $0x28] sm:$0xff]
      %v898 = vld [vmem:[%s891 + $0x30] sm:$0xff]
      %v899 = vld [vmem:[%s891 + $0x38] sm:$0xff]
      %v900 = vld [vmem:[%s891 + $0x40] sm:$0xff]
      %v902 = vsel %vm690, %v889, 0
      %v905 = vsel %vm690, %v890, 0
      %907 = vmatprep.subr.mxu0 0.0
      %908 = vmatpush1.msra.mxu0 %v892
      %909 = vmatprep.subr.mxu0 0.0
      %910 = vmatpush1.msra.mxu0 %v893
      %911 = vmatprep.subr.mxu0 0.0
      %912 = vmatpush1.msra.mxu0 %v894
      %913 = vmatprep.subr.mxu0 0.0
      %914 = vmatpush1.msra.mxu0 %v895
      %915 = vmatprep.subr.mxu0 0.0
      %916 = vmatpush1.msra.mxu0 %v896
      %917 = vmatprep.subr.mxu0 0.0
      %918 = vmatpush1.msra.mxu0 %v897
      %919 = vmatprep.subr.mxu0 0.0
      %920 = vmatpush1.msra.mxu0 %v898
      %921 = vmatprep.subr.mxu0 0.0
      %922 = vmatpush1.msra.mxu0 %v899
      %923 = vmatprep.subr.mxu0 0.0
      %924 = vmatpush1.msra.mxu0 %v900
      %925 = vmatprep.subr.mxu0 0.0
      %926 = vmatpush1.msra.mxu0 0.0
      %927 = vmatprep.subr.mxu0 0.0
      %928 = vmatpush1.msra.mxu0 0.0
      %929 = vmatprep.subr.mxu0 0.0
      %930 = vmatpush1.msra.mxu0 0.0
      %931 = vmatprep.subr.mxu0 0.0
      %932 = vmatpush1.msra.mxu0 0.0
      %933 = vmatprep.subr.mxu0 0.0
      %934 = vmatpush1.msra.mxu0 0.0
      %935 = vmatprep.subr.mxu0 0.0
      %936 = vmatpush1.msra.mxu0 0.0
      %937 = vmatprep.subr.mxu0 0.0
      %938 = vmatpush1.msra.mxu0 0.0
      %939 = vmatprep.subr.mxu0 0.0
      %940 = vmatpush1.msra.mxu0 0.0
      %941 = vmatprep.subr.mxu0 0.0
      %942 = vmatpush1.msra.mxu0 0.0
      %943 = vmatprep.subr.mxu0 0.0
      %944 = vmatpush1.msra.mxu0 0.0
      %945 = vmatprep.subr.mxu0 0.0
      %946 = vmatpush1.msra.mxu0 0.0
      %947 = vmatprep.subr.mxu0 0.0
      %948 = vmatpush1.msra.mxu0 0.0
      %949 = vmatprep.subr.mxu0 0.0
      %950 = vmatpush1.msra.mxu0 0.0
      %951 = vmatprep.subr.mxu0 0.0
      %952 = vmatpush1.msra.mxu0 0.0
      %953 = vmatprep.subr.mxu0 0.0
      %954 = vmatpush1.msra.mxu0 0.0
      %955 = vmatprep.subr.mxu0 0.0
      %956 = vmatpush1.msra.mxu0 0.0
      %957 = vmatprep.subr.mxu0 0.0
      %958 = vmatpush1.msra.mxu0 0.0
      %959 = vmatprep.subr.mxu0 0.0
      %960 = vmatpush1.msra.mxu0 0.0
      %961 = vmatprep.subr.mxu0 0.0
      %962 = vmatpush1.msra.mxu0 0.0
      %963 = vmatprep.subr.mxu0 0.0
      %964 = vmatpush1.msra.mxu0 0.0
      %965 = vmatprep.subr.mxu0 0.0
      %966 = vmatpush1.msra.mxu0 0.0
      %967 = vmatprep.subr.mxu0 0.0
      %968 = vmatpush1.msra.mxu0 0.0
      %969 = vmatprep.subr.mxu0 0.0
      %970 = vmatpush1.msra.mxu0 0.0
      %971 = vmatprep.mubr.f32.mxu0 0.0
      %972 = vmatmul.mubr.f32.gmra.mrb[0].mxu0 %v902
      %v973 = vpop.f32.mrb[0].mxu0
      %v974 = vadd.f32 0.0, %v973
      %v975 = vpop.f32.mrb[0].mxu0
      %976 = vmatprep.mubr.f32.mxu0 0.0
      %977 = vmatmul.mubr.f32.gmra.mrb[0].mxu0 %v905
      %v978 = vpop.f32.mrb[0].mxu0
      %v979 = vadd.f32 0.0, %v978
      %v980 = vpop.f32.mrb[0].mxu0
      %981 = vdwg.mxu0
      %v982 = vadd.f32 %v887, %v974
      %v983 = vadd.f32 %v888, %v979
      %vm984 = vcmp.gt.f32.partialorder %v982, 0.0
      %vm985 = vcmp.gt.f32.partialorder %v983, 0.0
      %v986 = vmul.f32 %v982, 0.1
      %v987 = vmul.f32 %v983, 0.1
      %v988 = vsel %vm984, %v982, %v986
      %v989 = vsel %vm985, %v983, %v987
      %v990 = vld [vmem:[%s8] sm:$0xff]
      %v991 = vld [vmem:[%s8 + $0x8] sm:$0xff]
      %v992 = vld [vmem:[%s8 + $0x10] sm:$0xff]
      %v993 = vld [vmem:[%s8 + $0x18] sm:$0xff]
      %v994 = vld [vmem:[%s8 + $0x20] sm:$0xff]
      %v995 = vld [vmem:[%s8 + $0x28] sm:$0xff]
      %v996 = vld [vmem:[%s8 + $0x30] sm:$0xff]
      %v997 = vld [vmem:[%s8 + $0x38] sm:$0xff]
      %v998 = vld [vmem:[%s8 + $0x40] sm:$0xff]
      %v999 = vld [vmem:[%s8 + $0x48] sm:$0xff]
      %v1000 = vld [vmem:[%s8 + $0x50] sm:$0xff]
      %v1001 = vld [vmem:[%s8 + $0x58] sm:$0xff]
      %v1002 = vld [vmem:[%s8 + $0x60] sm:$0xff]
      %v1003 = vld [vmem:[%s8 + $0x68] sm:$0xff]
      %v1004 = vld [vmem:[%s8 + $0x70] sm:$0xff]
      %v1005 = vld [vmem:[%s8 + $0x78] sm:$0xff]
      %v1006 = vld [vmem:[%s9] sm:$0x3]
      %v1008 = vlaneseq
      %v1009 = vshrl.u32 %v1008, 7
      %v1010 = vsub.s32 0, %v1009
      %v1011 = vrot.slane %v1006, %v1010
      %v1012 = vlaneseq
      %v1013 = vshrl.u32 %v1012, 7
      %v1014 = vsub.s32 1, %v1013
      %v1015 = vrot.slane %v1006, %v1014
      %vm1018 = vcmask 523264
      %v1020 = vsel %vm1018, %v988, 0
      %v1023 = vsel %vm1018, %v989, 0
      %1025 = vmatprep.subr.mxu0 %v991
      %1026 = vmatpush1.msra.mxu0 %v990
      %1027 = vmatprep.subr.mxu0 %v993
      %1028 = vmatpush1.msra.mxu0 %v992
      %1029 = vmatprep.subr.mxu0 %v995
      %1030 = vmatpush1.msra.mxu0 %v994
      %1031 = vmatprep.subr.mxu0 %v997
      %1032 = vmatpush1.msra.mxu0 %v996
      %1033 = vmatprep.subr.mxu0 %v999
      %1034 = vmatpush1.msra.mxu0 %v998
      %1035 = vmatprep.subr.mxu0 %v1001
      %1036 = vmatpush1.msra.mxu0 %v1000
      %1037 = vmatprep.subr.mxu0 %v1003
      %1038 = vmatpush1.msra.mxu0 %v1002
      %1039 = vmatprep.subr.mxu0 %v1005
      %1040 = vmatpush1.msra.mxu0 %v1004
      %1041 = vmatprep.subr.mxu0 0.0
      %1042 = vmatpush1.msra.mxu0 0.0
      %1043 = vmatprep.subr.mxu0 0.0
      %1044 = vmatpush1.msra.mxu0 0.0
      %1045 = vmatprep.subr.mxu0 0.0
      %1046 = vmatpush1.msra.mxu0 0.0
      %1047 = vmatprep.subr.mxu0 0.0
      %1048 = vmatpush1.msra.mxu0 0.0
      %1049 = vmatprep.subr.mxu0 0.0
      %1050 = vmatpush1.msra.mxu0 0.0
      %1051 = vmatprep.subr.mxu0 0.0
      %1052 = vmatpush1.msra.mxu0 0.0
      %1053 = vmatprep.subr.mxu0 0.0
      %1054 = vmatpush1.msra.mxu0 0.0
      %1055 = vmatprep.subr.mxu0 0.0
      %1056 = vmatpush1.msra.mxu0 0.0
      %1057 = vmatprep.subr.mxu0 0.0
      %1058 = vmatpush1.msra.mxu0 0.0
      %1059 = vmatprep.subr.mxu0 0.0
      %1060 = vmatpush1.msra.mxu0 0.0
      %1061 = vmatprep.subr.mxu0 0.0
      %1062 = vmatpush1.msra.mxu0 0.0
      %1063 = vmatprep.subr.mxu0 0.0
      %1064 = vmatpush1.msra.mxu0 0.0
      %1065 = vmatprep.subr.mxu0 0.0
      %1066 = vmatpush1.msra.mxu0 0.0
      %1067 = vmatprep.subr.mxu0 0.0
      %1068 = vmatpush1.msra.mxu0 0.0
      %1069 = vmatprep.subr.mxu0 0.0
      %1070 = vmatpush1.msra.mxu0 0.0
      %1071 = vmatprep.subr.mxu0 0.0
      %1072 = vmatpush1.msra.mxu0 0.0
      %1073 = vmatprep.subr.mxu0 0.0
      %1074 = vmatpush1.msra.mxu0 0.0
      %1075 = vmatprep.subr.mxu0 0.0
      %1076 = vmatpush1.msra.mxu0 0.0
      %1077 = vmatprep.subr.mxu0 0.0
      %1078 = vmatpush1.msra.mxu0 0.0
      %1079 = vmatprep.subr.mxu0 0.0
      %1080 = vmatpush1.msra.mxu0 0.0
      %1081 = vmatprep.subr.mxu0 0.0
      %1082 = vmatpush1.msra.mxu0 0.0
      %1083 = vmatprep.subr.mxu0 0.0
      %1084 = vmatpush1.msra.mxu0 0.0
      %1085 = vmatprep.subr.mxu0 0.0
      %1086 = vmatpush1.msra.mxu0 0.0
      %1087 = vmatprep.subr.mxu0 0.0
      %1088 = vmatpush1.msra.mxu0 0.0
      %1089 = vmatprep.mubr.f32.mxu0 0.0
      %1090 = vmatmul.mubr.f32.gmra.mrb[0].mxu0 %v1020
      %v1091 = vpop.f32.mrb[0].mxu0
      %v1092 = vadd.f32 %v1011, %v1091
      %v1093 = vpop.f32.mrb[0].mxu0
      %v1094 = vadd.f32 %v1015, %v1093
      %1095 = vmatprep.mubr.f32.mxu0 0.0
      %1096 = vmatmul.mubr.f32.gmra.mrb[0].mxu0 %v1023
      %v1097 = vpop.f32.mrb[0].mxu0
      %v1098 = vadd.f32 %v1011, %v1097
      %v1099 = vpop.f32.mrb[0].mxu0
      %v1100 = vadd.f32 %v1015, %v1099
      %1101 = vdwg.mxu0
      %v1102 = vld [vmem:[%s374] sm:$0xff]
      %v1103 = vld [vmem:[%s374 + $0x8] sm:$0xff]
      %v1104 = vld [vmem:[%s374 + $0x10] sm:$0xff]
      %v1105 = vld [vmem:[%s374 + $0x18] sm:$0xff]
      %v1106 = vadd.f32 %v1092, %v1102
      %v1107 = vadd.f32 %v1094, %v1103
      %v1108 = vadd.f32 %v1098, %v1104
      %v1109 = vadd.f32 %v1100, %v1105
      %1110 = vst [vmem:[%s379] sm:$0xff] %v1106
      %1111 = vst [vmem:[%s379 + $0x8] sm:$0xff] %v1107
      %1112 = vst [vmem:[%s379 + $0x10] sm:$0xff] %v1108
      %1113 = vst [vmem:[%s379 + $0x18] sm:$0xff] %v1109
      %p1114 = scmp.lt.s32.totalorder %s21, 1
      %s1115 = scalar_select %p1114, %s21, 1
      %s1116 = smul.addr %s1115, 4
      %s1117 = smul.addr %s1116, 8
      %s1118 = scalar_lea.vmem %s10, %s1117
      // Predicated region
      $region61: #{bottleneck_forward.1} parent=59 // pred_check
        %p1119 = pneg %p259
      $region62: #{bottleneck_forward.1} parent=59 // pred_check_branch
        %1121 = sbr.rel (%p1119) target = $region64
      $region63: #{bottleneck_forward.1} parent=59 // pred_region
        _
      $region64: #{bottleneck_forward.1} parent=59 // pred_fallthru
        _
    $region60: #{bottleneck_forward.1} parent=5 // pred_fallthru
      _
    %p1122 = scmp.le.s32.totalorder 2, %s16
    // Predicated region
    $region65: #{bottleneck_forward.1} parent=5 // pred_check
      %p1123 = pneg %p1122
    $region66: #{bottleneck_forward.1} parent=5 // pred_check_branch
      %1125 = sbr.rel (%p1123) target = $region68
    $region67: #{bottleneck_forward.1} parent=5 // pred_region
      %s1126 = ssub.s32 %s16, 2
      // Predicated region
      $region69: #{bottleneck_forward.1} parent=67 // pred_check
        %p1127 = pneg %p265
      $region70: #{bottleneck_forward.1} parent=67 // pred_check_branch
        %1129 = sbr.rel (%p1127) target = $region72
      $region71: #{bottleneck_forward.1} parent=67 // pred_region
        %p1130 = scmp.lt.s32.totalorder %s22, 1
        %s1131 = scalar_select %p1130, %s22, 1
        %s1132 = smul.addr %s1131, 4
        %s1133 = smul.addr %s1132, 8
        %s1134 = scalar_lea.vmem %s10, %s1133
      $region72: #{bottleneck_forward.1} parent=67 // pred_fallthru
        _
    $region68: #{bottleneck_forward.1} parent=5 // pred_fallthru
      _
  $region6: #{bottleneck_forward.1} parent=0 // loop_footer
    %s20 = sadd.s32 1, %s16
  $region7: #{bottleneck_forward.1} parent=0 // loop_footer_branch
    %15 = sbr.rel target = $region3
  $region8: #{bottleneck_forward.1} parent=0 // loop_exit
    _

</llo_original>
